<compile_context>
chip_gen: v7x
topology: tpu7x:2x2x1
jax: 0.10.0
libtpu: 0.0.40
codegen_flags: <defaults>
</compile_context>

<pallas_src>
import math

import jax
import jax.numpy as jnp
from jax.experimental import pallas as pl
from jax.experimental.pallas import tpu as pltpu


# ---------------------------------------------------------------------------
# Fused kernel.  Grid = (batch_blocks, glimpse); glimpse is the inner "arbitrary"
# axis, all running state lives in VMEM scratch that persists across it.
# ---------------------------------------------------------------------------

def _ban_kernel(v_ref, q_ref,
                att_v_w_ref, att_v_b_ref, att_q_w_ref, att_q_b_ref, h_mat_ref,
                bnet_v_w_ref, bnet_v_b_ref, bnet_q_w_ref, bnet_q_b_ref,
                q_prj_w_ref, q_prj_b_ref,
                fc1_w_ref, fc1_b_ref, fc2_w_ref, fc2_b_ref,
                out_ref, att_ref,
                vp3_ref, qp3_ref, maskadd_ref, q_cur_ref, xacc_ref):
    f32 = jnp.float32
    bf16 = jnp.bfloat16
    relu = lambda x: jnp.maximum(x, 0.0)

    BB, V, H = v_ref.shape
    Q = q_ref.shape[1]
    D3 = att_v_w_ref.shape[1]
    g = pl.program_id(1)
    num_g = pl.num_programs(1)

    # ---- per-batch-block setup (first glimpse only) -----------------------
    # Shared attention projections, additive -inf mask and running state are
    # computed once and reused across the glimpse axis.
    @pl.when(g == 0)
    def _init():
        v2 = v_ref[...].reshape(BB * V, H).astype(bf16)
        q2 = q_ref[...].reshape(BB * Q, H).astype(bf16)
        vp3_ref[...] = relu(jnp.dot(v2, att_v_w_ref[...],
                                    preferred_element_type=f32) + att_v_b_ref[...])
        qp3_ref[...] = relu(jnp.dot(q2, att_q_w_ref[...],
                                    preferred_element_type=f32) + att_q_b_ref[...])
        zero_row = jnp.sum(jnp.abs(v_ref[...]), axis=2, keepdims=True) == 0.0
        maskadd_ref[...] = jnp.where(zero_row, -jnp.inf, 0.0).astype(f32)
        q_cur_ref[...] = q_ref[...]
        xacc_ref[...] = jnp.zeros_like(xacc_ref)

    # ---- attention for glimpse g: fused logits + masked softmax over (V*Q) ----
    hv = (vp3_ref[...] * h_mat_ref[...]).reshape(BB, V, D3).astype(bf16)
    qh = qp3_ref[...].reshape(BB, Q, D3).astype(bf16)
    lg = jnp.einsum("bid,bjd->bij", hv, qh,
                    preferred_element_type=f32)                     # (BB, V, Q)
    # NOTE: h_bias[g] (a per-glimpse scalar added to every logit) cancels under the
    # softmax, so it is intentionally not added here.
    lg = lg + maskadd_ref[...]                                      # -inf on zero v rows
    mx = jnp.max(jnp.max(lg, axis=2, keepdims=True), axis=1, keepdims=True)
    mx = jnp.where(mx == -jnp.inf, 0.0, mx)                         # fully-masked guard
    e = jnp.exp(lg - mx)
    s = jnp.sum(jnp.sum(e, axis=2, keepdims=True), axis=1, keepdims=True)
    p = e * pl.reciprocal(jnp.maximum(s, 1e-30), approx=True)       # (BB, V, Q) f32
    att_ref[...] = p

    # ---- bilinear pooling for glimpse g + residual q projection ------------
    v2 = v_ref[...].reshape(BB * V, H).astype(bf16)
    vp = relu(jnp.dot(v2, bnet_v_w_ref[...], preferred_element_type=f32)
              + bnet_v_b_ref[...])                                  # (BB*V, H) f32
    qc = q_cur_ref[...].reshape(BB * Q, H).astype(bf16)
    qp = relu(jnp.dot(qc, bnet_q_w_ref[...], preferred_element_type=f32)
              + bnet_q_b_ref[...])                                  # (BB*Q, H) f32
    tmp = jnp.einsum("bij,bjh->bih", p.astype(bf16),
                     qp.reshape(BB, Q, H).astype(bf16),
                     preferred_element_type=f32)                    # (BB, V, H)
    b_emb = jnp.sum(tmp * vp.reshape(BB, V, H), axis=1)             # (BB, H)
    b_proj = (jnp.dot(b_emb.astype(bf16), q_prj_w_ref[...],
                      preferred_element_type=f32) + q_prj_b_ref[...])  # (BB, H)
    q_new = q_cur_ref[...] + b_proj[:, None, :]                     # broadcast over seq
    q_cur_ref[...] = q_new
    xacc_ref[...] = xacc_ref[...] + jnp.sum(q_new, axis=1)          # sum_g sum_seq q

    # ---- final classifier after the last glimpse ---------------------------
    @pl.when(g == num_g - 1)
    def _finalize():
        x = xacc_ref[...].astype(bf16)                              # (BB, H)
        h1 = relu(jnp.dot(x, fc1_w_ref[...], preferred_element_type=f32)
                  + fc1_b_ref[...])                                 # (BB, 2H)
        out_ref[...] = (jnp.dot(h1.astype(bf16), fc2_w_ref[...],
                                preferred_element_type=f32)
                        + fc2_b_ref[...]).astype(out_ref.dtype)     # (BB, A)


# ---------------------------------------------------------------------------
# Wrapper: single pallas_call over grid=(B//BB, G)
# ---------------------------------------------------------------------------

def ban_forward(v, q, params, *, block_b=None):
    B, V, H = v.shape
    Q = q.shape[1]
    G = int(params["glimpse"])
    D3 = params["att_v_w"].shape[1]
    H2 = params["fc1_w"].shape[1]
    A = params["fc2_w"].shape[1]

    # Batch block: at realistic sizes pick BB so BB*V ~ 256 and B//BB is a multiple
    # of 2 (v7x megacore).  Partial blocks must keep the sublane constraint.
    BB = B if block_b is None else int(block_b)
    assert B % BB == 0, "batch must be divisible by the batch block"
    assert BB == B or BB % 8 == 0, "partial batch blocks must be a multiple of 8 rows"
    NB = B // BB

    f32, bf16 = jnp.float32, jnp.bfloat16
    # bf16 weights halve HBM->VMEM traffic and run the MXU at native rate; every dot
    # accumulates in f32 (preferred_element_type).  Biases / h_mat stay f32.
    wcast = lambda x: x.astype(bf16)
    weights = (
        wcast(params["att_v_w"]), params["att_v_b"].astype(f32),
        wcast(params["att_q_w"]), params["att_q_b"].astype(f32),
        params["h_mat"].astype(f32),
        wcast(params["bnet_v_w"]), params["bnet_v_b"].astype(f32),
        wcast(params["bnet_q_w"]), params["bnet_q_b"].astype(f32),
        wcast(params["q_prj_w"]), params["q_prj_b"].astype(f32),
        wcast(params["fc1_w"]), params["fc1_b"].astype(f32),
        wcast(params["fc2_w"]), params["fc2_b"].astype(f32),
    )
    # h_bias (G,1,1) is not passed: it cancels exactly under the softmax and raw
    # attention logits are not part of BanModel.forward's outputs.

    const2 = lambda shp: pl.BlockSpec(shp, lambda b, g: (0, 0))        # fetched once
    per_g = lambda tail: pl.BlockSpec((None,) + tail, lambda b, g: (g, 0, 0))

    in_specs = [
        pl.BlockSpec((BB, V, H), lambda b, g: (b, 0, 0)),              # v
        pl.BlockSpec((BB, Q, H), lambda b, g: (b, 0, 0)),              # q
        const2((H, D3)), const2((1, D3)),                              # attention v_net
        const2((H, D3)), const2((1, D3)),                              # attention q_net
        per_g((1, D3)),                                                # h_mat[g]
        per_g((H, H)), per_g((1, H)),                                  # b_net[g].v_net
        per_g((H, H)), per_g((1, H)),                                  # b_net[g].q_net
        per_g((H, H)), per_g((1, H)),                                  # q_prj[g]
        const2((H, H2)), const2((1, H2)),                              # fc1
        const2((H2, A)), const2((1, A)),                               # fc2
    ]
    out_specs = (
        pl.BlockSpec((BB, A), lambda b, g: (b, 0)),                    # classifier logits
        pl.BlockSpec((None, BB, V, Q), lambda b, g: (g, b, 0, 0)),     # attention per g
    )
    scratch_shapes = [
        pltpu.VMEM((BB * V, D3), f32),   # vp3 (shared across glimpses)
        pltpu.VMEM((BB * Q, D3), f32),   # qp3 (shared across glimpses)
        pltpu.VMEM((BB, V, 1), f32),     # additive -inf v-mask
        pltpu.VMEM((BB, Q, H), f32),     # running q
        pltpu.VMEM((BB, H), f32),        # sum_g sum_seq q accumulator
    ]

    # Explicit scoped-VMEM budget: resident/streamed weights + double-buffered I/O
    # blocks + scratch, plus margin (defaults of 16/32 MiB can reject larger tiles).
    nbytes = lambda x: math.prod(x.shape) * x.dtype.itemsize
    blk_bytes = 4 * (BB * V * H + BB * Q * H + BB * A + BB * V * Q)
    scr_bytes = 4 * (BB * V * D3 + BB * Q * D3 + BB * V + BB * Q * H + BB * H)
    vmem_limit = int(2 * (sum(nbytes(w) for w in weights) + blk_bytes)
                     + scr_bytes + (8 << 20))
    vmem_limit = min(vmem_limit, 100 << 20)

    out, att = pl.pallas_call(
        _ban_kernel,
        out_shape=(jax.ShapeDtypeStruct((B, A), f32),
                   jax.ShapeDtypeStruct((G, B, V, Q), f32)),
        grid=(NB, G),
        in_specs=in_specs,
        out_specs=out_specs,
        scratch_shapes=scratch_shapes,
        compiler_params=pltpu.CompilerParams(
            dimension_semantics=("parallel", "arbitrary"),
            vmem_limit_bytes=vmem_limit),
    )(v, q, *weights)
    return out, jnp.transpose(att, (1, 0, 2, 3))


# ---------------------------------------------------------------------------
# Pure-JAX f32 reference (for correctness check)
# ---------------------------------------------------------------------------

def ban_forward_ref(v, q, params):
    B, V, H = v.shape
    Q = q.shape[1]
    G = params["glimpse"]
    relu = lambda x: jnp.maximum(x, 0.0)

    vp3 = relu(v @ params["att_v_w"] + params["att_v_b"][0])
    qp3 = relu(q @ params["att_q_w"] + params["att_q_b"][0])
    hmat = params["h_mat"][:, 0, :]
    logits = (jnp.einsum("bid,gd,bjd->bgij", vp3, hmat, qp3)
              + params["h_bias"].reshape(1, G, 1, 1))
    mask = (jnp.sum(jnp.abs(v), axis=2) == 0)[:, None, :, None]
    logits = jnp.where(jnp.broadcast_to(mask, logits.shape), -jnp.inf, logits)
    att = jax.nn.softmax(logits.reshape(B, G, V * Q), axis=2).reshape(B, G, V, Q)

    q_cur = q
    q_emb = jnp.zeros_like(q)
    for g in range(G):
        vp = relu(v @ params["bnet_v_w"][g] + params["bnet_v_b"][g][0])
        qp = relu(q_cur @ params["bnet_q_w"][g] + params["bnet_q_b"][g][0])
        b_emb = jnp.einsum("bih,bij,bjh->bh", vp, att[:, g], qp)
        q_cur = q_cur + (b_emb @ params["q_prj_w"][g] + params["q_prj_b"][g][0])[:, None, :]
        q_emb = q_emb + q_cur
    x = jnp.sum(q_emb, axis=1)
    h = relu(x @ params["fc1_w"] + params["fc1_b"][0])
    return h @ params["fc2_w"] + params["fc2_b"][0], att


# ---------------------------------------------------------------------------
# Deterministic parameter init (shapes per BanModel.__init__; h_mm == HIDDEN_SIZE)
# ---------------------------------------------------------------------------

def init_params(key, H, G, k_att, answer_size):
    D3 = H * k_att
    keys = iter(jax.random.split(key, 32))
    nrm = lambda shape, s=0.1: (s * jax.random.normal(next(keys), shape)).astype(jnp.float32)
    return {
        "glimpse": G,
        # BiAttention BCNet (k=3): v_net / q_net H -> 3*h_mm, plus h_mat / h_bias
        "att_v_w": nrm((H, D3)), "att_v_b": nrm((1, D3), 0.05),
        "att_q_w": nrm((H, D3)), "att_q_b": nrm((1, D3), 0.05),
        "h_mat": nrm((G, 1, D3), 1.0),
        "h_bias": nrm((G, 1, 1), 1.0),
        # Per-glimpse BCNet (k=1) v_net / q_net and q_prj linear, stacked along G
        "bnet_v_w": nrm((G, H, H)), "bnet_v_b": nrm((G, 1, H), 0.05),
        "bnet_q_w": nrm((G, H, H)), "bnet_q_b": nrm((G, 1, H), 0.05),
        "q_prj_w": nrm((G, H, H)), "q_prj_b": nrm((G, 1, H), 0.05),
        # Final classifier
        "fc1_w": nrm((H, 2 * H)), "fc1_b": nrm((1, 2 * H), 0.05),
        "fc2_w": nrm((2 * H, answer_size)), "fc2_b": nrm((1, answer_size), 0.05),
    }


# ---------------------------------------------------------------------------

if __name__ == "__main__":
    B, V, Q, H = 2, 8, 8, 32          # batch, num_objs, seq_len, HIDDEN_SIZE (= h_mm)
    G, K_ATT, ANSWER = 2, 3, 16       # gamma (glimpse), BCNet k for attention, answer_size

    key = jax.random.PRNGKey(0)
    kv, kq, kp = jax.random.split(key, 3)
    v = jax.random.normal(kv, (B, V, H), dtype=jnp.float32)
    q = jax.random.normal(kq, (B, Q, H), dtype=jnp.float32)
    v = v.at[0, V - 1, :].set(0.0)    # exercise the all-zero-object -inf mask path
    params = init_params(kp, H, G, K_ATT, ANSWER)

    out, att = ban_forward(v, q, params)
    out = jax.block_until_ready(out)
    att = jax.block_until_ready(att)

    out_ref, att_ref = ban_forward_ref(v, q, params)
    assert out.shape == (B, ANSWER), out.shape
    assert att.shape == (B, G, V, Q), att.shape
    # bf16 matmul operands (with f32 accumulation) => slightly looser tolerances than f32.
    assert jnp.allclose(att, att_ref, rtol=2e-2, atol=5e-3), "attention mismatch"
    assert jnp.allclose(out, out_ref, rtol=5e-2, atol=5e-2), "logits mismatch"

    print("KERNEL_OK")
</pallas_src>

<mosaic_0001>
module attributes {stable_mosaic.version = 11 : i64} {
  func.func @_ban_kernel(%arg0: i32, %arg1: i32, %arg2: memref<2x8x32xf32, #tpu.memory_space<vmem>>, %arg3: memref<2x8x32xf32, #tpu.memory_space<vmem>>, %arg4: memref<32x96xbf16, #tpu.memory_space<vmem>>, %arg5: memref<1x96xf32, #tpu.memory_space<vmem>>, %arg6: memref<32x96xbf16, #tpu.memory_space<vmem>>, %arg7: memref<1x96xf32, #tpu.memory_space<vmem>>, %arg8: memref<1x1x96xf32, #tpu.memory_space<vmem>>, %arg9: memref<1x32x32xbf16, #tpu.memory_space<vmem>>, %arg10: memref<1x1x32xf32, #tpu.memory_space<vmem>>, %arg11: memref<1x32x32xbf16, #tpu.memory_space<vmem>>, %arg12: memref<1x1x32xf32, #tpu.memory_space<vmem>>, %arg13: memref<1x32x32xbf16, #tpu.memory_space<vmem>>, %arg14: memref<1x1x32xf32, #tpu.memory_space<vmem>>, %arg15: memref<32x64xbf16, #tpu.memory_space<vmem>>, %arg16: memref<1x64xf32, #tpu.memory_space<vmem>>, %arg17: memref<64x16xbf16, #tpu.memory_space<vmem>>, %arg18: memref<1x16xf32, #tpu.memory_space<vmem>>, %arg19: memref<2x16xf32, #tpu.memory_space<vmem>>, %arg20: memref<1x2x8x8xf32, #tpu.memory_space<vmem>>, %arg21: memref<16x96xf32, #tpu.memory_space<vmem>>, %arg22: memref<16x96xf32, #tpu.memory_space<vmem>>, %arg23: memref<2x8x1xf32, #tpu.memory_space<vmem>>, %arg24: memref<2x8x32xf32, #tpu.memory_space<vmem>>, %arg25: memref<2x32xf32, #tpu.memory_space<vmem>>) attributes {dimension_semantics = [#tpu.dimension_semantics<parallel>, #tpu.dimension_semantics<arbitrary>], iteration_bounds = array<i64: 1, 2>, scalar_prefetch = 0 : i64, scratch_operands = 5 : i64, tpu.core_type = #tpu.core_type<tc>, window_params = [{transform_indices = @transform_0, window_bounds = array<i64: 2, 8, 32>}, {transform_indices = @transform_1, window_bounds = array<i64: 2, 8, 32>}, {pipeline_mode = #tpu.pipeline_mode<synchronous>, transform_indices = @transform_2, window_bounds = array<i64: 32, 96>}, {pipeline_mode = #tpu.pipeline_mode<synchronous>, transform_indices = @transform_3, window_bounds = array<i64: 1, 96>}, {pipeline_mode = #tpu.pipeline_mode<synchronous>, transform_indices = @transform_4, window_bounds = array<i64: 32, 96>}, {pipeline_mode = #tpu.pipeline_mode<synchronous>, transform_indices = @transform_5, window_bounds = array<i64: 1, 96>}, {transform_indices = @transform_6, window_bounds = array<i64: 1, 1, 96>}, {transform_indices = @transform_7, window_bounds = array<i64: 1, 32, 32>}, {transform_indices = @transform_8, window_bounds = array<i64: 1, 1, 32>}, {transform_indices = @transform_9, window_bounds = array<i64: 1, 32, 32>}, {transform_indices = @transform_10, window_bounds = array<i64: 1, 1, 32>}, {transform_indices = @transform_11, window_bounds = array<i64: 1, 32, 32>}, {transform_indices = @transform_12, window_bounds = array<i64: 1, 1, 32>}, {pipeline_mode = #tpu.pipeline_mode<synchronous>, transform_indices = @transform_13, window_bounds = array<i64: 32, 64>}, {pipeline_mode = #tpu.pipeline_mode<synchronous>, transform_indices = @transform_14, window_bounds = array<i64: 1, 64>}, {pipeline_mode = #tpu.pipeline_mode<synchronous>, transform_indices = @transform_15, window_bounds = array<i64: 64, 16>}, {pipeline_mode = #tpu.pipeline_mode<synchronous>, transform_indices = @transform_16, window_bounds = array<i64: 1, 16>}, {transform_indices = @transform_17, window_bounds = array<i64: 2, 16>}, {transform_indices = @transform_18, window_bounds = array<i64: 1, 2, 8, 8>}]} {
    %c0_i32 = arith.constant 0 : i32
    %0 = arith.cmpi eq, %arg1, %c0_i32 : i32
    %1 = arith.extui %0 : i1 to i32
    %c0_i32_0 = arith.constant 0 : i32
    %2 = arith.cmpi ne, %1, %c0_i32_0 : i32
    scf.if %2 {
      %c0_64 = arith.constant 0 : index
      %c0_65 = arith.constant 0 : index
      %c0_66 = arith.constant 0 : index
      %91 = vector.load %arg2[%c0_64, %c0_65, %c0_66] : memref<2x8x32xf32, #tpu.memory_space<vmem>>, vector<2x8x32xf32>
      %92 = vector.shape_cast %91 : vector<2x8x32xf32> to vector<16x32xf32>
      %93 = arith.truncf %92 : vector<16x32xf32> to vector<16x32xbf16>
      %c0_67 = arith.constant 0 : index
      %c0_68 = arith.constant 0 : index
      %c0_69 = arith.constant 0 : index
      %94 = vector.load %arg3[%c0_67, %c0_68, %c0_69] : memref<2x8x32xf32, #tpu.memory_space<vmem>>, vector<2x8x32xf32>
      %95 = vector.shape_cast %94 : vector<2x8x32xf32> to vector<16x32xf32>
      %96 = arith.truncf %95 : vector<16x32xf32> to vector<16x32xbf16>
      %c0_70 = arith.constant 0 : index
      %c0_71 = arith.constant 0 : index
      %97 = vector.load %arg4[%c0_70, %c0_71] : memref<32x96xbf16, #tpu.memory_space<vmem>>, vector<32x96xbf16>
      %cst_72 = arith.constant dense<0.000000e+00> : vector<16x96xf32>
      %98 = tpu.matmul %93, %97, %cst_72 {dimension_numbers = #tpu.dot_dimension_numbers<[1], [0], [0], [1], [0, 0, 1, 1], [], []>} : vector<16x32xbf16>, vector<32x96xbf16>, vector<16x96xf32> -> vector<16x96xf32>
      %c0_73 = arith.constant 0 : index
      %c0_74 = arith.constant 0 : index
      %99 = vector.load %arg5[%c0_73, %c0_74] : memref<1x96xf32, #tpu.memory_space<vmem>>, vector<1x96xf32>
      %100 = vector.broadcast %99 : vector<1x96xf32> to vector<16x96xf32>
      %101 = arith.addf %98, %100 : vector<16x96xf32>
      %cst_75 = arith.constant 0.000000e+00 : f32
      %102 = vector.broadcast %cst_75 : f32 to vector<16x96xf32>
      %103 = arith.maximumf %101, %102 : vector<16x96xf32>
      %c0_76 = arith.constant 0 : index
      %c0_77 = arith.constant 0 : index
      %104 = vector.load %arg21[%c0_76, %c0_77] : memref<16x96xf32, #tpu.memory_space<vmem>>, vector<16x96xf32>
      tpu.vector_store %arg21[%c0_76, %c0_77], %103 {strides = array<i32>} : memref<16x96xf32, #tpu.memory_space<vmem>>, vector<16x96xf32>,
      %c0_78 = arith.constant 0 : index
      %c0_79 = arith.constant 0 : index
      %105 = vector.load %arg6[%c0_78, %c0_79] : memref<32x96xbf16, #tpu.memory_space<vmem>>, vector<32x96xbf16>
      %cst_80 = arith.constant dense<0.000000e+00> : vector<16x96xf32>
      %106 = tpu.matmul %96, %105, %cst_80 {dimension_numbers = #tpu.dot_dimension_numbers<[1], [0], [0], [1], [0, 0, 1, 1], [], []>} : vector<16x32xbf16>, vector<32x96xbf16>, vector<16x96xf32> -> vector<16x96xf32>
      %c0_81 = arith.constant 0 : index
      %c0_82 = arith.constant 0 : index
      %107 = vector.load %arg7[%c0_81, %c0_82] : memref<1x96xf32, #tpu.memory_space<vmem>>, vector<1x96xf32>
      %108 = vector.broadcast %107 : vector<1x96xf32> to vector<16x96xf32>
      %109 = arith.addf %106, %108 : vector<16x96xf32>
      %cst_83 = arith.constant 0.000000e+00 : f32
      %110 = vector.broadcast %cst_83 : f32 to vector<16x96xf32>
      %111 = arith.maximumf %109, %110 : vector<16x96xf32>
      %c0_84 = arith.constant 0 : index
      %c0_85 = arith.constant 0 : index
      %112 = vector.load %arg22[%c0_84, %c0_85] : memref<16x96xf32, #tpu.memory_space<vmem>>, vector<16x96xf32>
      tpu.vector_store %arg22[%c0_84, %c0_85], %111 {strides = array<i32>} : memref<16x96xf32, #tpu.memory_space<vmem>>, vector<16x96xf32>,
      %c0_86 = arith.constant 0 : index
      %c0_87 = arith.constant 0 : index
      %c0_88 = arith.constant 0 : index
      %113 = vector.load %arg2[%c0_86, %c0_87, %c0_88] : memref<2x8x32xf32, #tpu.memory_space<vmem>>, vector<2x8x32xf32>
      %114 = math.absf %113 : vector<2x8x32xf32>
      %cst_89 = arith.constant dense<0.000000e+00> : vector<2x8xf32>
      %115 = vector.multi_reduction <add>, %114, %cst_89 [2] : vector<2x8x32xf32> to vector<2x8xf32>
      %116 = vector.shape_cast %115 : vector<2x8xf32> to vector<2x8x1xf32>
      %cst_90 = arith.constant 0.000000e+00 : f32
      %117 = vector.broadcast %cst_90 : f32 to vector<2x8x1xf32>
      %118 = arith.cmpf oeq, %116, %117 : vector<2x8x1xf32>
      %cst_91 = arith.constant 0xFF800000 : f32
      %cst_92 = arith.constant 0.000000e+00 : f32
      %119 = vector.broadcast %cst_91 : f32 to vector<2x8x1xf32>
      %120 = vector.broadcast %cst_92 : f32 to vector<2x8x1xf32>
      %121 = arith.select %118, %119, %120 : vector<2x8x1xi1>, vector<2x8x1xf32>
      %c0_93 = arith.constant 0 : index
      %c0_94 = arith.constant 0 : index
      %c0_95 = arith.constant 0 : index
      %122 = vector.load %arg23[%c0_93, %c0_94, %c0_95] : memref<2x8x1xf32, #tpu.memory_space<vmem>>, vector<2x8x1xf32>
      tpu.vector_store %arg23[%c0_93, %c0_94, %c0_95], %121 {strides = array<i32>} : memref<2x8x1xf32, #tpu.memory_space<vmem>>, vector<2x8x1xf32>,
      %c0_96 = arith.constant 0 : index
      %c0_97 = arith.constant 0 : index
      %c0_98 = arith.constant 0 : index
      %123 = vector.load %arg3[%c0_96, %c0_97, %c0_98] : memref<2x8x32xf32, #tpu.memory_space<vmem>>, vector<2x8x32xf32>
      %c0_99 = arith.constant 0 : index
      %c0_100 = arith.constant 0 : index
      %c0_101 = arith.constant 0 : index
      %124 = vector.load %arg24[%c0_99, %c0_100, %c0_101] : memref<2x8x32xf32, #tpu.memory_space<vmem>>, vector<2x8x32xf32>
      tpu.vector_store %arg24[%c0_99, %c0_100, %c0_101], %123 {strides = array<i32>} : memref<2x8x32xf32, #tpu.memory_space<vmem>>, vector<2x8x32xf32>,
      %cst_102 = arith.constant 0.000000e+00 : f32
      %125 = vector.broadcast %cst_102 : f32 to vector<2x32xf32>
      %c0_103 = arith.constant 0 : index
      %c0_104 = arith.constant 0 : index
      %126 = vector.load %arg25[%c0_103, %c0_104] : memref<2x32xf32, #tpu.memory_space<vmem>>, vector<2x32xf32>
      tpu.vector_store %arg25[%c0_103, %c0_104], %125 {strides = array<i32>} : memref<2x32xf32, #tpu.memory_space<vmem>>, vector<2x32xf32>,
    } else {
    }
    %c0 = arith.constant 0 : index
    %c0_1 = arith.constant 0 : index
    %3 = vector.load %arg21[%c0, %c0_1] : memref<16x96xf32, #tpu.memory_space<vmem>>, vector<16x96xf32>
    %c0_2 = arith.constant 0 : index
    %c0_3 = arith.constant 0 : index
    %c0_4 = arith.constant 0 : index
    %4 = vector.load %arg8[%c0_2, %c0_3, %c0_4] : memref<1x1x96xf32, #tpu.memory_space<vmem>>, vector<1x1x96xf32>
    %5 = vector.shape_cast %4 : vector<1x1x96xf32> to vector<1x96xf32>
    %6 = vector.broadcast %5 : vector<1x96xf32> to vector<16x96xf32>
    %7 = arith.mulf %3, %6 : vector<16x96xf32>
    %8 = vector.shape_cast %7 : vector<16x96xf32> to vector<2x8x96xf32>
    %9 = arith.truncf %8 : vector<2x8x96xf32> to vector<2x8x96xbf16>
    %c0_5 = arith.constant 0 : index
    %c0_6 = arith.constant 0 : index
    %10 = vector.load %arg22[%c0_5, %c0_6] : memref<16x96xf32, #tpu.memory_space<vmem>>, vector<16x96xf32>
    %11 = vector.shape_cast %10 : vector<16x96xf32> to vector<2x8x96xf32>
    %12 = arith.truncf %11 : vector<2x8x96xf32> to vector<2x8x96xbf16>
    "tpu.trace_start"() <{level = 10 : i32, message = "bid,bjd->bij"}> : () -> ()
    %cst = arith.constant dense<0.000000e+00> : vector<2x8x8xf32>
    %13 = tpu.matmul %9, %12, %cst {dimension_numbers = #tpu.dot_dimension_numbers<[2], [2], [1], [1], [0, 0, 0, 1, 1, 1], [0], [0]>} : vector<2x8x96xbf16>, vector<2x8x96xbf16>, vector<2x8x8xf32> -> vector<2x8x8xf32>
    "tpu.trace_stop"() : () -> ()
    %c0_7 = arith.constant 0 : index
    %c0_8 = arith.constant 0 : index
    %c0_9 = arith.constant 0 : index
    %14 = vector.load %arg23[%c0_7, %c0_8, %c0_9] : memref<2x8x1xf32, #tpu.memory_space<vmem>>, vector<2x8x1xf32>
    %15 = vector.broadcast %14 : vector<2x8x1xf32> to vector<2x8x8xf32>
    %16 = arith.addf %13, %15 : vector<2x8x8xf32>
    %cst_10 = arith.constant dense<0xFF800000> : vector<2x8xf32>
    %17 = vector.multi_reduction <maximumf>, %16, %cst_10 [2] : vector<2x8x8xf32> to vector<2x8xf32>
    %18 = vector.shape_cast %17 : vector<2x8xf32> to vector<2x8x1xf32>
    %cst_11 = arith.constant dense<0xFF800000> : vector<2x1xf32>
    %19 = vector.multi_reduction <maximumf>, %18, %cst_11 [1] : vector<2x8x1xf32> to vector<2x1xf32>
    %20 = vector.shape_cast %19 : vector<2x1xf32> to vector<2x1x1xf32>
    %cst_12 = arith.constant 0xFF800000 : f32
    %21 = vector.broadcast %cst_12 : f32 to vector<2x1x1xf32>
    %22 = arith.cmpf oeq, %20, %21 : vector<2x1x1xf32>
    %cst_13 = arith.constant 0.000000e+00 : f32
    %23 = vector.broadcast %cst_13 : f32 to vector<2x1x1xf32>
    %24 = arith.select %22, %23, %20 : vector<2x1x1xi1>, vector<2x1x1xf32>
    %25 = vector.broadcast %24 : vector<2x1x1xf32> to vector<2x8x8xf32>
    %26 = arith.subf %16, %25 : vector<2x8x8xf32>
    %27 = math.exp %26 : vector<2x8x8xf32>
    %cst_14 = arith.constant dense<0.000000e+00> : vector<2x8xf32>
    %28 = vector.multi_reduction <add>, %27, %cst_14 [2] : vector<2x8x8xf32> to vector<2x8xf32>
    %29 = vector.shape_cast %28 : vector<2x8xf32> to vector<2x8x1xf32>
    %cst_15 = arith.constant dense<0.000000e+00> : vector<2x1xf32>
    %30 = vector.multi_reduction <add>, %29, %cst_15 [1] : vector<2x8x1xf32> to vector<2x1xf32>
    %31 = vector.shape_cast %30 : vector<2x1xf32> to vector<2x1x1xf32>
    %cst_16 = arith.constant 1.000000e-30 : f32
    %32 = vector.broadcast %cst_16 : f32 to vector<2x1x1xf32>
    %33 = arith.maximumf %31, %32 : vector<2x1x1xf32>
    %34 = tpu.reciprocal %33 {approx = true} : vector<2x1x1xf32> -> vector<2x1x1xf32>
    %35 = vector.broadcast %34 : vector<2x1x1xf32> to vector<2x8x8xf32>
    %36 = arith.mulf %27, %35 : vector<2x8x8xf32>
    %c0_17 = arith.constant 0 : index
    %c0_18 = arith.constant 0 : index
    %c0_19 = arith.constant 0 : index
    %c0_20 = arith.constant 0 : index
    %37 = vector.load %arg20[%c0_17, %c0_18, %c0_19, %c0_20] : memref<1x2x8x8xf32, #tpu.memory_space<vmem>>, vector<1x2x8x8xf32>
    %38 = vector.shape_cast %37 : vector<1x2x8x8xf32> to vector<2x8x8xf32>
    %39 = vector.shape_cast %36 : vector<2x8x8xf32> to vector<1x2x8x8xf32>
    tpu.vector_store %arg20[%c0_17, %c0_18, %c0_19, %c0_20], %39 {strides = array<i32>} : memref<1x2x8x8xf32, #tpu.memory_space<vmem>>, vector<1x2x8x8xf32>,
    %c0_21 = arith.constant 0 : index
    %c0_22 = arith.constant 0 : index
    %c0_23 = arith.constant 0 : index
    %40 = vector.load %arg2[%c0_21, %c0_22, %c0_23] : memref<2x8x32xf32, #tpu.memory_space<vmem>>, vector<2x8x32xf32>
    %41 = vector.shape_cast %40 : vector<2x8x32xf32> to vector<16x32xf32>
    %42 = arith.truncf %41 : vector<16x32xf32> to vector<16x32xbf16>
    %c0_24 = arith.constant 0 : index
    %c0_25 = arith.constant 0 : index
    %c0_26 = arith.constant 0 : index
    %43 = vector.load %arg9[%c0_24, %c0_25, %c0_26] : memref<1x32x32xbf16, #tpu.memory_space<vmem>>, vector<1x32x32xbf16>
    %44 = vector.shape_cast %43 : vector<1x32x32xbf16> to vector<32x32xbf16>
    %cst_27 = arith.constant dense<0.000000e+00> : vector<16x32xf32>
    %45 = tpu.matmul %42, %44, %cst_27 {dimension_numbers = #tpu.dot_dimension_numbers<[1], [0], [0], [1], [0, 0, 1, 1], [], []>} : vector<16x32xbf16>, vector<32x32xbf16>, vector<16x32xf32> -> vector<16x32xf32>
    %c0_28 = arith.constant 0 : index
    %c0_29 = arith.constant 0 : index
    %c0_30 = arith.constant 0 : index
    %46 = vector.load %arg10[%c0_28, %c0_29, %c0_30] : memref<1x1x32xf32, #tpu.memory_space<vmem>>, vector<1x1x32xf32>
    %47 = vector.shape_cast %46 : vector<1x1x32xf32> to vector<1x32xf32>
    %48 = vector.broadcast %47 : vector<1x32xf32> to vector<16x32xf32>
    %49 = arith.addf %45, %48 : vector<16x32xf32>
    %cst_31 = arith.constant 0.000000e+00 : f32
    %50 = vector.broadcast %cst_31 : f32 to vector<16x32xf32>
    %51 = arith.maximumf %49, %50 : vector<16x32xf32>
    %c0_32 = arith.constant 0 : index
    %c0_33 = arith.constant 0 : index
    %c0_34 = arith.constant 0 : index
    %52 = vector.load %arg24[%c0_32, %c0_33, %c0_34] : memref<2x8x32xf32, #tpu.memory_space<vmem>>, vector<2x8x32xf32>
    %53 = vector.shape_cast %52 : vector<2x8x32xf32> to vector<16x32xf32>
    %54 = arith.truncf %53 : vector<16x32xf32> to vector<16x32xbf16>
    %c0_35 = arith.constant 0 : index
    %c0_36 = arith.constant 0 : index
    %c0_37 = arith.constant 0 : index
    %55 = vector.load %arg11[%c0_35, %c0_36, %c0_37] : memref<1x32x32xbf16, #tpu.memory_space<vmem>>, vector<1x32x32xbf16>
    %56 = vector.shape_cast %55 : vector<1x32x32xbf16> to vector<32x32xbf16>
    %cst_38 = arith.constant dense<0.000000e+00> : vector<16x32xf32>
    %57 = tpu.matmul %54, %56, %cst_38 {dimension_numbers = #tpu.dot_dimension_numbers<[1], [0], [0], [1], [0, 0, 1, 1], [], []>} : vector<16x32xbf16>, vector<32x32xbf16>, vector<16x32xf32> -> vector<16x32xf32>
    %c0_39 = arith.constant 0 : index
    %c0_40 = arith.constant 0 : index
    %c0_41 = arith.constant 0 : index
    %58 = vector.load %arg12[%c0_39, %c0_40, %c0_41] : memref<1x1x32xf32, #tpu.memory_space<vmem>>, vector<1x1x32xf32>
    %59 = vector.shape_cast %58 : vector<1x1x32xf32> to vector<1x32xf32>
    %60 = vector.broadcast %59 : vector<1x32xf32> to vector<16x32xf32>
    %61 = arith.addf %57, %60 : vector<16x32xf32>
    %cst_42 = arith.constant 0.000000e+00 : f32
    %62 = vector.broadcast %cst_42 : f32 to vector<16x32xf32>
    %63 = arith.maximumf %61, %62 : vector<16x32xf32>
    %64 = arith.truncf %36 : vector<2x8x8xf32> to vector<2x8x8xbf16>
    %65 = vector.shape_cast %63 : vector<16x32xf32> to vector<2x8x32xf32>
    %66 = arith.truncf %65 : vector<2x8x32xf32> to vector<2x8x32xbf16>
    "tpu.trace_start"() <{level = 10 : i32, message = "bij,bjh->bih"}> : () -> ()
    %cst_43 = arith.constant dense<0.000000e+00> : vector<2x8x32xf32>
    %67 = tpu.matmul %64, %66, %cst_43 {dimension_numbers = #tpu.dot_dimension_numbers<[2], [1], [1], [2], [0, 0, 0, 1, 1, 2], [0], [0]>} : vector<2x8x8xbf16>, vector<2x8x32xbf16>, vector<2x8x32xf32> -> vector<2x8x32xf32>
    "tpu.trace_stop"() : () -> ()
    %68 = vector.shape_cast %51 : vector<16x32xf32> to vector<2x8x32xf32>
    %69 = arith.mulf %67, %68 : vector<2x8x32xf32>
    %cst_44 = arith.constant dense<0.000000e+00> : vector<2x32xf32>
    %70 = vector.multi_reduction <add>, %69, %cst_44 [1] : vector<2x8x32xf32> to vector<2x32xf32>
    %71 = arith.truncf %70 : vector<2x32xf32> to vector<2x32xbf16>
    %c0_45 = arith.constant 0 : index
    %c0_46 = arith.constant 0 : index
    %c0_47 = arith.constant 0 : index
    %72 = vector.load %arg13[%c0_45, %c0_46, %c0_47] : memref<1x32x32xbf16, #tpu.memory_space<vmem>>, vector<1x32x32xbf16>
    %73 = vector.shape_cast %72 : vector<1x32x32xbf16> to vector<32x32xbf16>
    %cst_48 = arith.constant dense<0.000000e+00> : vector<2x32xf32>
    %74 = tpu.matmul %71, %73, %cst_48 {dimension_numbers = #tpu.dot_dimension_numbers<[1], [0], [0], [1], [0, 0, 1, 1], [], []>} : vector<2x32xbf16>, vector<32x32xbf16>, vector<2x32xf32> -> vector<2x32xf32>
    %c0_49 = arith.constant 0 : index
    %c0_50 = arith.constant 0 : index
    %c0_51 = arith.constant 0 : index
    %75 = vector.load %arg14[%c0_49, %c0_50, %c0_51] : memref<1x1x32xf32, #tpu.memory_space<vmem>>, vector<1x1x32xf32>
    %76 = vector.shape_cast %75 : vector<1x1x32xf32> to vector<1x32xf32>
    %77 = vector.broadcast %76 : vector<1x32xf32> to vector<2x32xf32>
    %78 = arith.addf %74, %77 : vector<2x32xf32>
    %c0_52 = arith.constant 0 : index
    %c0_53 = arith.constant 0 : index
    %c0_54 = arith.constant 0 : index
    %79 = vector.load %arg24[%c0_52, %c0_53, %c0_54] : memref<2x8x32xf32, #tpu.memory_space<vmem>>, vector<2x8x32xf32>
    %80 = vector.shape_cast %78 : vector<2x32xf32> to vector<2x1x32xf32>
    %81 = vector.broadcast %80 : vector<2x1x32xf32> to vector<2x8x32xf32>
    %82 = arith.addf %79, %81 : vector<2x8x32xf32>
    %c0_55 = arith.constant 0 : index
    %c0_56 = arith.constant 0 : index
    %c0_57 = arith.constant 0 : index
    %83 = vector.load %arg24[%c0_55, %c0_56, %c0_57] : memref<2x8x32xf32, #tpu.memory_space<vmem>>, vector<2x8x32xf32>
    tpu.vector_store %arg24[%c0_55, %c0_56, %c0_57], %82 {strides = array<i32>} : memref<2x8x32xf32, #tpu.memory_space<vmem>>, vector<2x8x32xf32>,
    %c0_58 = arith.constant 0 : index
    %c0_59 = arith.constant 0 : index
    %84 = vector.load %arg25[%c0_58, %c0_59] : memref<2x32xf32, #tpu.memory_space<vmem>>, vector<2x32xf32>
    %cst_60 = arith.constant dense<0.000000e+00> : vector<2x32xf32>
    %85 = vector.multi_reduction <add>, %82, %cst_60 [1] : vector<2x8x32xf32> to vector<2x32xf32>
    %86 = arith.addf %84, %85 : vector<2x32xf32>
    %c0_61 = arith.constant 0 : index
    %c0_62 = arith.constant 0 : index
    %87 = vector.load %arg25[%c0_61, %c0_62] : memref<2x32xf32, #tpu.memory_space<vmem>>, vector<2x32xf32>
    tpu.vector_store %arg25[%c0_61, %c0_62], %86 {strides = array<i32>} : memref<2x32xf32, #tpu.memory_space<vmem>>, vector<2x32xf32>,
    %c1_i32 = arith.constant 1 : i32
    %88 = arith.cmpi eq, %arg1, %c1_i32 : i32
    %89 = arith.extui %88 : i1 to i32
    %c0_i32_63 = arith.constant 0 : i32
    %90 = arith.cmpi ne, %89, %c0_i32_63 : i32
    scf.if %90 {
      %c0_64 = arith.constant 0 : index
      %c0_65 = arith.constant 0 : index
      %91 = vector.load %arg25[%c0_64, %c0_65] : memref<2x32xf32, #tpu.memory_space<vmem>>, vector<2x32xf32>
      %92 = arith.truncf %91 : vector<2x32xf32> to vector<2x32xbf16>
      %c0_66 = arith.constant 0 : index
      %c0_67 = arith.constant 0 : index
      %93 = vector.load %arg15[%c0_66, %c0_67] : memref<32x64xbf16, #tpu.memory_space<vmem>>, vector<32x64xbf16>
      %cst_68 = arith.constant dense<0.000000e+00> : vector<2x64xf32>
      %94 = tpu.matmul %92, %93, %cst_68 {dimension_numbers = #tpu.dot_dimension_numbers<[1], [0], [0], [1], [0, 0, 1, 1], [], []>} : vector<2x32xbf16>, vector<32x64xbf16>, vector<2x64xf32> -> vector<2x64xf32>
      %c0_69 = arith.constant 0 : index
      %c0_70 = arith.constant 0 : index
      %95 = vector.load %arg16[%c0_69, %c0_70] : memref<1x64xf32, #tpu.memory_space<vmem>>, vector<1x64xf32>
      %96 = vector.broadcast %95 : vector<1x64xf32> to vector<2x64xf32>
      %97 = arith.addf %94, %96 : vector<2x64xf32>
      %cst_71 = arith.constant 0.000000e+00 : f32
      %98 = vector.broadcast %cst_71 : f32 to vector<2x64xf32>
      %99 = arith.maximumf %97, %98 : vector<2x64xf32>
      %100 = arith.truncf %99 : vector<2x64xf32> to vector<2x64xbf16>
      %c0_72 = arith.constant 0 : index
      %c0_73 = arith.constant 0 : index
      %101 = vector.load %arg17[%c0_72, %c0_73] : memref<64x16xbf16, #tpu.memory_space<vmem>>, vector<64x16xbf16>
      %cst_74 = arith.constant dense<0.000000e+00> : vector<2x16xf32>
      %102 = tpu.matmul %100, %101, %cst_74 {dimension_numbers = #tpu.dot_dimension_numbers<[1], [0], [0], [1], [0, 0, 1, 1], [], []>} : vector<2x64xbf16>, vector<64x16xbf16>, vector<2x16xf32> -> vector<2x16xf32>
      %c0_75 = arith.constant 0 : index
      %c0_76 = arith.constant 0 : index
      %103 = vector.load %arg18[%c0_75, %c0_76] : memref<1x16xf32, #tpu.memory_space<vmem>>, vector<1x16xf32>
      %104 = vector.broadcast %103 : vector<1x16xf32> to vector<2x16xf32>
      %105 = arith.addf %102, %104 : vector<2x16xf32>
      %c0_77 = arith.constant 0 : index
      %c0_78 = arith.constant 0 : index
      %106 = vector.load %arg19[%c0_77, %c0_78] : memref<2x16xf32, #tpu.memory_space<vmem>>, vector<2x16xf32>
      tpu.vector_store %arg19[%c0_77, %c0_78], %105 {strides = array<i32>} : memref<2x16xf32, #tpu.memory_space<vmem>>, vector<2x16xf32>,
    } else {
    }
    return
  }
  func.func @transform_0(%arg0: i32, %arg1: i32) -> (i32, i32, i32) {
    %c0_i32 = arith.constant 0 : i32
    %c0_i32_0 = arith.constant 0 : i32
    %c0_i32_1 = arith.constant 0 : i32
    return %arg0, %c0_i32, %c0_i32_0 : i32, i32, i32
  }
  func.func @transform_1(%arg0: i32, %arg1: i32) -> (i32, i32, i32) {
    %c0_i32 = arith.constant 0 : i32
    %c0_i32_0 = arith.constant 0 : i32
    %c0_i32_1 = arith.constant 0 : i32
    return %arg0, %c0_i32, %c0_i32_0 : i32, i32, i32
  }
  func.func @transform_2(%arg0: i32, %arg1: i32) -> (i32, i32) {
    %c0_i32 = arith.constant 0 : i32
    %c0_i32_0 = arith.constant 0 : i32
    %c0_i32_1 = arith.constant 0 : i32
    return %c0_i32, %c0_i32_0 : i32, i32
  }
  func.func @transform_3(%arg0: i32, %arg1: i32) -> (i32, i32) {
    %c0_i32 = arith.constant 0 : i32
    %c0_i32_0 = arith.constant 0 : i32
    %c0_i32_1 = arith.constant 0 : i32
    return %c0_i32, %c0_i32_0 : i32, i32
  }
  func.func @transform_4(%arg0: i32, %arg1: i32) -> (i32, i32) {
    %c0_i32 = arith.constant 0 : i32
    %c0_i32_0 = arith.constant 0 : i32
    %c0_i32_1 = arith.constant 0 : i32
    return %c0_i32, %c0_i32_0 : i32, i32
  }
  func.func @transform_5(%arg0: i32, %arg1: i32) -> (i32, i32) {
    %c0_i32 = arith.constant 0 : i32
    %c0_i32_0 = arith.constant 0 : i32
    %c0_i32_1 = arith.constant 0 : i32
    return %c0_i32, %c0_i32_0 : i32, i32
  }
  func.func @transform_6(%arg0: i32, %arg1: i32) -> (i32, i32, i32) {
    %c0_i32 = arith.constant 0 : i32
    %c0_i32_0 = arith.constant 0 : i32
    %c0_i32_1 = arith.constant 0 : i32
    return %arg1, %c0_i32, %c0_i32_0 : i32, i32, i32
  }
  func.func @transform_7(%arg0: i32, %arg1: i32) -> (i32, i32, i32) {
    %c0_i32 = arith.constant 0 : i32
    %c0_i32_0 = arith.constant 0 : i32
    %c0_i32_1 = arith.constant 0 : i32
    return %arg1, %c0_i32, %c0_i32_0 : i32, i32, i32
  }
  func.func @transform_8(%arg0: i32, %arg1: i32) -> (i32, i32, i32) {
    %c0_i32 = arith.constant 0 : i32
    %c0_i32_0 = arith.constant 0 : i32
    %c0_i32_1 = arith.constant 0 : i32
    return %arg1, %c0_i32, %c0_i32_0 : i32, i32, i32
  }
  func.func @transform_9(%arg0: i32, %arg1: i32) -> (i32, i32, i32) {
    %c0_i32 = arith.constant 0 : i32
    %c0_i32_0 = arith.constant 0 : i32
    %c0_i32_1 = arith.constant 0 : i32
    return %arg1, %c0_i32, %c0_i32_0 : i32, i32, i32
  }
  func.func @transform_10(%arg0: i32, %arg1: i32) -> (i32, i32, i32) {
    %c0_i32 = arith.constant 0 : i32
    %c0_i32_0 = arith.constant 0 : i32
    %c0_i32_1 = arith.constant 0 : i32
    return %arg1, %c0_i32, %c0_i32_0 : i32, i32, i32
  }
  func.func @transform_11(%arg0: i32, %arg1: i32) -> (i32, i32, i32) {
    %c0_i32 = arith.constant 0 : i32
    %c0_i32_0 = arith.constant 0 : i32
    %c0_i32_1 = arith.constant 0 : i32
    return %arg1, %c0_i32, %c0_i32_0 : i32, i32, i32
  }
  func.func @transform_12(%arg0: i32, %arg1: i32) -> (i32, i32, i32) {
    %c0_i32 = arith.constant 0 : i32
    %c0_i32_0 = arith.constant 0 : i32
    %c0_i32_1 = arith.constant 0 : i32
    return %arg1, %c0_i32, %c0_i32_0 : i32, i32, i32
  }
  func.func @transform_13(%arg0: i32, %arg1: i32) -> (i32, i32) {
    %c0_i32 = arith.constant 0 : i32
    %c0_i32_0 = arith.constant 0 : i32
    %c0_i32_1 = arith.constant 0 : i32
    return %c0_i32, %c0_i32_0 : i32, i32
  }
  func.func @transform_14(%arg0: i32, %arg1: i32) -> (i32, i32) {
    %c0_i32 = arith.constant 0 : i32
    %c0_i32_0 = arith.constant 0 : i32
    %c0_i32_1 = arith.constant 0 : i32
    return %c0_i32, %c0_i32_0 : i32, i32
  }
  func.func @transform_15(%arg0: i32, %arg1: i32) -> (i32, i32) {
    %c0_i32 = arith.constant 0 : i32
    %c0_i32_0 = arith.constant 0 : i32
    %c0_i32_1 = arith.constant 0 : i32
    return %c0_i32, %c0_i32_0 : i32, i32
  }
  func.func @transform_16(%arg0: i32, %arg1: i32) -> (i32, i32) {
    %c0_i32 = arith.constant 0 : i32
    %c0_i32_0 = arith.constant 0 : i32
    %c0_i32_1 = arith.constant 0 : i32
    return %c0_i32, %c0_i32_0 : i32, i32
  }
  func.func @transform_17(%arg0: i32, %arg1: i32) -> (i32, i32) {
    %c0_i32 = arith.constant 0 : i32
    %c0_i32_0 = arith.constant 0 : i32
    return %arg0, %c0_i32 : i32, i32
  }
  func.func @transform_18(%arg0: i32, %arg1: i32) -> (i32, i32, i32, i32) {
    %c0_i32 = arith.constant 0 : i32
    %c0_i32_0 = arith.constant 0 : i32
    %c0_i32_1 = arith.constant 0 : i32
    return %arg1, %arg0, %c0_i32, %c0_i32_0 : i32, i32, i32, i32
  }
}

</mosaic_0001>

<llo_original>
// kernel: tpu_custom_call.1
$region0: #{tpu_custom_call.1}
  #allocation0 [shape = 'u32[]', space=smem, size = 0x4, offset = 0x4, fixed_abs, tag = 'smem constant byte address 0x4 - core index']
  #allocation1 [shape = 'u32[144,128]{1,0:T(1,128)}', space=vmem, size = 0x12000, scoped, tag = 'internal scratch']
  #allocation2 [shape = 'f32[16,96]{1,0:T(8,128)}', space=vmem, size = 0x2000, scoped, tag = 'scratch operand']
  #allocation3 [shape = 'f32[16,96]{1,0:T(8,128)}', space=vmem, size = 0x2000, scoped, tag = 'scratch operand']
  #allocation4 [shape = 'f32[2,8,1]{2,1,0:T(8,128)}', space=vmem, size = 0x2000, scoped, tag = 'scratch operand']
  #allocation5 [shape = 'f32[2,8,32]{2,1,0:T(8,128)}', space=vmem, size = 0x2000, scoped, tag = 'scratch operand']
  #allocation6 [shape = 'f32[2,32]{1,0:T(2,128)}', space=vmem, size = 0x400, scoped, tag = 'scratch operand']
  %s0 = inlined_call_operand.hbm [shape: f32[2,8,32], index: 0, kind: input, shape index: {}]
  %s1 = inlined_call_operand.hbm [shape: f32[2,8,32], index: 1, kind: input, shape index: {}]
  %s2 = inlined_call_operand.hbm [shape: bf16[32,96], index: 2, kind: input, shape index: {}]
  %s3 = inlined_call_operand.vmem [shape: f32[1,96], index: 3, kind: input, shape index: {}]
  %s4 = inlined_call_operand.hbm [shape: bf16[32,96], index: 4, kind: input, shape index: {}]
  %s5 = inlined_call_operand.hbm [shape: f32[1,96], index: 5, kind: input, shape index: {}]
  %s6 = inlined_call_operand.hbm [shape: f32[2,1,96], index: 6, kind: input, shape index: {}]
  %s7 = inlined_call_operand.vmem [shape: bf16[2,32,32], index: 7, kind: input, shape index: {}]
  %s8 = inlined_call_operand.hbm [shape: f32[2,1,32], index: 8, kind: input, shape index: {}]
  %s9 = inlined_call_operand.vmem [shape: bf16[2,32,32], index: 9, kind: input, shape index: {}]
  %s10 = inlined_call_operand.hbm [shape: f32[2,1,32], index: 10, kind: input, shape index: {}]
  %s11 = inlined_call_operand.hbm [shape: bf16[2,32,32], index: 11, kind: input, shape index: {}]
  %s12 = inlined_call_operand.hbm [shape: f32[2,1,32], index: 12, kind: input, shape index: {}]
  %s13 = inlined_call_operand.vmem [shape: bf16[32,64], index: 13, kind: input, shape index: {}]
  %s14 = inlined_call_operand.vmem [shape: f32[1,64], index: 14, kind: input, shape index: {}]
  %s15 = inlined_call_operand.vmem [shape: bf16[64,16], index: 15, kind: input, shape index: {}]
  %s16 = inlined_call_operand.vmem [shape: f32[1,16], index: 16, kind: input, shape index: {}]
  %s17 = inlined_call_operand.hbm [shape: f32[2,16], index: 17, kind: output, shape index: {0}]
  %s18 = inlined_call_operand.hbm [shape: f32[2,2,8,8], index: 18, kind: output, shape index: {1}]
  %19 = xla_tuple %s17, %s18
  %s20 = sld [smem:[#allocation0]]
  $region157: #{tpu_custom_call.1} parent=0
    _
  %s22 = ssub.s32 1, %s20
  %s23 = scalar_select 0, %s22, %s20
  $region1: #{tpu_custom_call.1} parent=0
    #allocation7 [shape = 'u8[8192]{0}', space=vmem, size = 0x2000, scoped, tag = 'input window, operand 0, single buffered']
    #allocation8 [shape = 's32[2]{0}', space=sflag, size = 0x8, scoped, tag = 'scoped memory for tpu_custom_call.1']
    #allocation9 [shape = 's32[2]{0}', space=sflag, size = 0x8, scoped, tag = 'scoped memory for tpu_custom_call.1']
    #allocation10 [shape = 'u8[8192]{0}', space=vmem, size = 0x2000, scoped, tag = 'input window, operand 1, single buffered']
    #allocation11 [shape = 's32[1]{0}', space=sflag, size = 0x4, scoped, tag = 'scoped memory for tpu_custom_call.1']
    #allocation12 [shape = 'u8[8192]{0}', space=vmem, size = 0x2000, scoped, tag = 'input window, operand 2, single buffered']
    #allocation13 [shape = 'u8[8192]{0}', space=vmem, size = 0x2000, scoped, tag = 'input window, operand 4, single buffered']
    #allocation14 [shape = 's32[1]{0}', space=sflag, size = 0x4, scoped, tag = 'scoped memory for tpu_custom_call.1']
    #allocation15 [shape = 'u8[512]{0}', space=vmem, size = 0x400, scoped, tag = 'input window, operand 5, single buffered']
    #allocation16 [shape = 'u8[1024]{0}', space=vmem, size = 0x400, scoped, tag = 'input window, operand 6']
    #allocation17 [shape = 's32[2]{0}', space=sflag, size = 0x8, scoped, tag = 'scoped memory for tpu_custom_call.1']
    #allocation18 [shape = 'u8[1024]{0}', space=vmem, size = 0x400, scoped, tag = 'input window, operand 8']
    #allocation19 [shape = 'u8[1024]{0}', space=vmem, size = 0x400, scoped, tag = 'input window, operand 10']
    #allocation20 [shape = 's32[2]{0}', space=sflag, size = 0x8, scoped, tag = 'scoped memory for tpu_custom_call.1']
    #allocation21 [shape = 'u8[16384]{0}', space=vmem, size = 0x4000, scoped, tag = 'input window, operand 11']
    #allocation22 [shape = 'u8[1024]{0}', space=vmem, size = 0x400, scoped, tag = 'input window, operand 12']
    #allocation23 [shape = 's32[2]{0}', space=sflag, size = 0x8, scoped, tag = 'scoped memory for tpu_custom_call.1']
    #allocation24 [shape = 'u8[1024]{0}', space=vmem, size = 0x400, scoped, tag = 'output window, operand 0, single buffered']
    #allocation25 [shape = 'u8[16384]{0}', space=vmem, size = 0x4000, scoped, tag = 'output window, operand 1']
    #allocation26 [shape = 's32[2]{0}', space=sflag, size = 0x8, scoped, tag = 'scoped memory for tpu_custom_call.1']
    %24 = vsyncpa [#allocation8], 0
    %25 = vsyncpa [#allocation11], 0
    %26 = vsyncpa [#allocation14], 0
    %27 = vsyncpa [#allocation17], 0
    %s28 = scalar_lea.sflag [#allocation17], 1
    %29 = vsyncpa %s28, 0
    %30 = vsyncpa [#allocation20], 0
    %s31 = scalar_lea.sflag [#allocation20], 1
    %32 = vsyncpa %s31, 0
    %33 = vsyncpa [#allocation23], 0
    %s34 = scalar_lea.sflag [#allocation23], 1
    %35 = vsyncpa %s34, 0
    %36 = vsyncpa [#allocation9], 0
    %37 = vsyncpa [#allocation26], 0
    %s38 = scalar_lea.sflag [#allocation26], 1
    %39 = vsyncpa %s38, 0
    loop: start=0, step=1, limit=4
    $region2: #{tpu_custom_call.1} parent=1 // loop_pre_header
      _
    $region3: #{tpu_custom_call.1} parent=1 // loop_header
      %s41 = sphi 0, %s45
      %p42 = scmp.ge.s32.totalorder %s41, 4
      %s48 = sphi 0, %s60
      %s49 = sphi 0, %s56
      %s50 = sphi 0, %s48
      %s51 = sphi 0, %s49
      %s52 = sphi 0, %s50
      %s53 = sphi 0, %s51
      %s63 = sphi 0, %s65
      %s66 = sphi 0, %s63
      %s67 = sphi 0, %s66
      %s83 = sphi 0, %s67
      %s89 = sphi 0, %s91
      %s92 = sphi 0, %s89
      %s93 = sphi 0, %s92
      %s109 = sphi 0, %s93
      %s113 = sphi 0, %s113
      %s115 = sphi 0, %s113
      %s116 = sphi 0, %s115
      %s130 = sphi 0, %s116
      %s134 = sphi 0, %s134
      %s136 = sphi 0, %s134
      %s137 = sphi 0, %s136
      %s151 = sphi 0, %s137
      %s155 = sphi 0, %s155
      %s157 = sphi 0, %s155
      %s158 = sphi 0, %s157
      %s172 = sphi 0, %s158
      %s176 = sphi 0, %s176
      %s178 = sphi 0, %s176
      %s179 = sphi 0, %s178
      %s193 = sphi 0, %s179
      %s199 = sphi 0, %s201
      %s202 = sphi 0, %s199
      %s203 = sphi 0, %s202
      %s219 = sphi 0, %s203
      %s225 = sphi 0, %s227
      %s228 = sphi 0, %s225
      %s229 = sphi 0, %s228
      %s245 = sphi 0, %s229
      %s251 = sphi 0, %s253
      %s254 = sphi 0, %s251
      %s255 = sphi 0, %s254
      %s271 = sphi 0, %s255
      %s277 = sphi 0, %s279
      %s280 = sphi 0, %s277
      %s281 = sphi 0, %s280
      %s297 = sphi 0, %s281
      %s303 = sphi 0, %s305
      %s306 = sphi 0, %s303
      %s307 = sphi 0, %s306
      %s323 = sphi 0, %s307
      %s329 = sphi 0, %s331
      %s332 = sphi 0, %s329
      %s333 = sphi 0, %s332
      %s349 = sphi 0, %s333
      %s355 = sphi 0, %s357
      %s358 = sphi 0, %s355
      %s359 = sphi 0, %s358
      %s375 = sphi 0, %s359
      %s379 = sphi 0, %s379
      %s381 = sphi 0, %s379
      %s382 = sphi 0, %s381
      %s396 = sphi 0, %s382
      %s400 = sphi 0, %s400
      %s402 = sphi 0, %s400
      %s403 = sphi 0, %s402
      %s417 = sphi 0, %s403
      %s421 = sphi 0, %s421
      %s423 = sphi 0, %s421
      %s424 = sphi 0, %s423
      %s438 = sphi 0, %s424
      %s442 = sphi 0, %s442
      %s444 = sphi 0, %s442
      %s445 = sphi 0, %s444
      %s459 = sphi 0, %s445
      %s465 = sphi 0, %s467
      %s468 = sphi 0, %s465
      %s469 = sphi 0, %s468
      %s485 = sphi 0, %s469
      %s493 = sphi 0, %s495
      %s496 = sphi 0, %s493
      %s497 = sphi 0, %s496
      %s513 = sphi 0, %s497
    $region4: #{tpu_custom_call.1} parent=1 // loop_header_branch
      %44 = sbr.rel (%p42) target = $region8
    $region5: #{tpu_custom_call.1} parent=1 // loop_body
      %s46 = ssub.s32 %s41, 1
      %s47 = ssub.s32 %s41, 2
      %s54 = sadd.s32 1, %s49
      %p55 = scmp.ge.s32.totalorder %s54, 2
      %s56 = scalar_select %p55, 0, %s54
      %s57 = sadd.s32 1, %s48
      %s58 = scalar_select %p55, %s57, %s48
      %p59 = scmp.ge.s32.totalorder %s58, 1
      %s60 = scalar_select %p59, 0, %s58
      %s61 = ssub.s32 %s48, %s60
      %p62 = scmp.eq.s32.totalorder %s61, 0
      %s64 = sadd.s32 %s63, 1
      %s65 = scalar_select %p62, %s63, %s64
      %p68 = pneg %p62
      %p69 = scmp.eq.s32.totalorder %s41, 1
      %p70 = por %p68, %p69
      %p71 = scmp.ne.s32.totalorder %s63, %s66
      %p72 = scmp.eq.s32.totalorder %s41, 0
      %p73 = por %p71, %p72
      %p74 = scmp.ne.s32.totalorder %s63, %s66
      %p75 = scmp.eq.s32.totalorder %s46, 1
      %p76 = por %p74, %p75
      %p77 = scmp.ne.s32.totalorder %s66, %s67
      %p78 = scmp.eq.s32.totalorder %s46, 0
      %p79 = por %p77, %p78
      %p80 = scmp.ne.s32.totalorder %s66, %s67
      %p81 = scmp.eq.s32.totalorder %s47, 1
      %p82 = por %p80, %p81
      %p84 = scmp.ne.s32.totalorder %s67, %s83
      %p85 = scmp.eq.s32.totalorder %s47, 0
      %p86 = por %p84, %p85
      %s87 = ssub.s32 %s48, %s60
      %p88 = scmp.eq.s32.totalorder %s87, 0
      %s90 = sadd.s32 %s89, 1
      %s91 = scalar_select %p88, %s89, %s90
      %p94 = pneg %p88
      %p95 = scmp.eq.s32.totalorder %s41, 1
      %p96 = por %p94, %p95
      %p97 = scmp.ne.s32.totalorder %s89, %s92
      %p98 = scmp.eq.s32.totalorder %s41, 0
      %p99 = por %p97, %p98
      %p100 = scmp.ne.s32.totalorder %s89, %s92
      %p101 = scmp.eq.s32.totalorder %s46, 1
      %p102 = por %p100, %p101
      %p103 = scmp.ne.s32.totalorder %s92, %s93
      %p104 = scmp.eq.s32.totalorder %s46, 0
      %p105 = por %p103, %p104
      %p106 = scmp.ne.s32.totalorder %s92, %s93
      %p107 = scmp.eq.s32.totalorder %s47, 1
      %p108 = por %p106, %p107
      %p110 = scmp.ne.s32.totalorder %s93, %s109
      %p111 = scmp.eq.s32.totalorder %s47, 0
      %p112 = por %p110, %p111
      %s114 = sadd.s32 %s113, 1
      %p117 = scmp.eq.s32.totalorder %s41, 1
      %p118 = scmp.ne.s32.totalorder %s113, %s115
      %p119 = scmp.eq.s32.totalorder %s41, 0
      %p120 = por %p118, %p119
      %p121 = scmp.ne.s32.totalorder %s113, %s115
      %p122 = scmp.eq.s32.totalorder %s46, 1
      %p123 = por %p121, %p122
      %p124 = scmp.ne.s32.totalorder %s115, %s116
      %p125 = scmp.eq.s32.totalorder %s46, 0
      %p126 = por %p124, %p125
      %p127 = scmp.ne.s32.totalorder %s115, %s116
      %p128 = scmp.eq.s32.totalorder %s47, 1
      %p129 = por %p127, %p128
      %p131 = scmp.ne.s32.totalorder %s116, %s130
      %p132 = scmp.eq.s32.totalorder %s47, 0
      %p133 = por %p131, %p132
      %s135 = sadd.s32 %s134, 1
      %p138 = scmp.eq.s32.totalorder %s41, 1
      %p139 = scmp.ne.s32.totalorder %s134, %s136
      %p140 = scmp.eq.s32.totalorder %s41, 0
      %p141 = por %p139, %p140
      %p142 = scmp.ne.s32.totalorder %s134, %s136
      %p143 = scmp.eq.s32.totalorder %s46, 1
      %p144 = por %p142, %p143
      %p145 = scmp.ne.s32.totalorder %s136, %s137
      %p146 = scmp.eq.s32.totalorder %s46, 0
      %p147 = por %p145, %p146
      %p148 = scmp.ne.s32.totalorder %s136, %s137
      %p149 = scmp.eq.s32.totalorder %s47, 1
      %p150 = por %p148, %p149
      %p152 = scmp.ne.s32.totalorder %s137, %s151
      %p153 = scmp.eq.s32.totalorder %s47, 0
      %p154 = por %p152, %p153
      %s156 = sadd.s32 %s155, 1
      %p159 = scmp.eq.s32.totalorder %s41, 1
      %p160 = scmp.ne.s32.totalorder %s155, %s157
      %p161 = scmp.eq.s32.totalorder %s41, 0
      %p162 = por %p160, %p161
      %p163 = scmp.ne.s32.totalorder %s155, %s157
      %p164 = scmp.eq.s32.totalorder %s46, 1
      %p165 = por %p163, %p164
      %p166 = scmp.ne.s32.totalorder %s157, %s158
      %p167 = scmp.eq.s32.totalorder %s46, 0
      %p168 = por %p166, %p167
      %p169 = scmp.ne.s32.totalorder %s157, %s158
      %p170 = scmp.eq.s32.totalorder %s47, 1
      %p171 = por %p169, %p170
      %p173 = scmp.ne.s32.totalorder %s158, %s172
      %p174 = scmp.eq.s32.totalorder %s47, 0
      %p175 = por %p173, %p174
      %s177 = sadd.s32 %s176, 1
      %p180 = scmp.eq.s32.totalorder %s41, 1
      %p181 = scmp.ne.s32.totalorder %s176, %s178
      %p182 = scmp.eq.s32.totalorder %s41, 0
      %p183 = por %p181, %p182
      %p184 = scmp.ne.s32.totalorder %s176, %s178
      %p185 = scmp.eq.s32.totalorder %s46, 1
      %p186 = por %p184, %p185
      %p187 = scmp.ne.s32.totalorder %s178, %s179
      %p188 = scmp.eq.s32.totalorder %s46, 0
      %p189 = por %p187, %p188
      %p190 = scmp.ne.s32.totalorder %s178, %s179
      %p191 = scmp.eq.s32.totalorder %s47, 1
      %p192 = por %p190, %p191
      %p194 = scmp.ne.s32.totalorder %s179, %s193
      %p195 = scmp.eq.s32.totalorder %s47, 0
      %p196 = por %p194, %p195
      %s197 = ssub.s32 %s49, %s56
      %p198 = scmp.eq.s32.totalorder %s197, 0
      %s200 = sadd.s32 %s199, 1
      %s201 = scalar_select %p198, %s199, %s200
      %p204 = pneg %p198
      %p205 = scmp.eq.s32.totalorder %s41, 1
      %p206 = por %p204, %p205
      %p207 = scmp.ne.s32.totalorder %s199, %s202
      %p208 = scmp.eq.s32.totalorder %s41, 0
      %p209 = por %p207, %p208
      %p210 = scmp.ne.s32.totalorder %s199, %s202
      %p211 = scmp.eq.s32.totalorder %s46, 1
      %p212 = por %p210, %p211
      %p213 = scmp.ne.s32.totalorder %s202, %s203
      %p214 = scmp.eq.s32.totalorder %s46, 0
      %p215 = por %p213, %p214
      %p216 = scmp.ne.s32.totalorder %s202, %s203
      %p217 = scmp.eq.s32.totalorder %s47, 1
      %p218 = por %p216, %p217
      %p220 = scmp.ne.s32.totalorder %s203, %s219
      %p221 = scmp.eq.s32.totalorder %s47, 0
      %p222 = por %p220, %p221
      %s223 = ssub.s32 %s49, %s56
      %p224 = scmp.eq.s32.totalorder %s223, 0
      %s226 = sadd.s32 %s225, 1
      %s227 = scalar_select %p224, %s225, %s226
      %p230 = pneg %p224
      %p231 = scmp.eq.s32.totalorder %s41, 1
      %p232 = por %p230, %p231
      %p233 = scmp.ne.s32.totalorder %s225, %s228
      %p234 = scmp.eq.s32.totalorder %s41, 0
      %p235 = por %p233, %p234
      %p236 = scmp.ne.s32.totalorder %s225, %s228
      %p237 = scmp.eq.s32.totalorder %s46, 1
      %p238 = por %p236, %p237
      %p239 = scmp.ne.s32.totalorder %s228, %s229
      %p240 = scmp.eq.s32.totalorder %s46, 0
      %p241 = por %p239, %p240
      %p242 = scmp.ne.s32.totalorder %s228, %s229
      %p243 = scmp.eq.s32.totalorder %s47, 1
      %p244 = por %p242, %p243
      %p246 = scmp.ne.s32.totalorder %s229, %s245
      %p247 = scmp.eq.s32.totalorder %s47, 0
      %p248 = por %p246, %p247
      %s249 = ssub.s32 %s49, %s56
      %p250 = scmp.eq.s32.totalorder %s249, 0
      %s252 = sadd.s32 %s251, 1
      %s253 = scalar_select %p250, %s251, %s252
      %p256 = pneg %p250
      %p257 = scmp.eq.s32.totalorder %s41, 1
      %p258 = por %p256, %p257
      %p259 = scmp.ne.s32.totalorder %s251, %s254
      %p260 = scmp.eq.s32.totalorder %s41, 0
      %p261 = por %p259, %p260
      %p262 = scmp.ne.s32.totalorder %s251, %s254
      %p263 = scmp.eq.s32.totalorder %s46, 1
      %p264 = por %p262, %p263
      %p265 = scmp.ne.s32.totalorder %s254, %s255
      %p266 = scmp.eq.s32.totalorder %s46, 0
      %p267 = por %p265, %p266
      %p268 = scmp.ne.s32.totalorder %s254, %s255
      %p269 = scmp.eq.s32.totalorder %s47, 1
      %p270 = por %p268, %p269
      %p272 = scmp.ne.s32.totalorder %s255, %s271
      %p273 = scmp.eq.s32.totalorder %s47, 0
      %p274 = por %p272, %p273
      %s275 = ssub.s32 %s49, %s56
      %p276 = scmp.eq.s32.totalorder %s275, 0
      %s278 = sadd.s32 %s277, 1
      %s279 = scalar_select %p276, %s277, %s278
      %p282 = pneg %p276
      %p283 = scmp.eq.s32.totalorder %s41, 1
      %p284 = por %p282, %p283
      %p285 = scmp.ne.s32.totalorder %s277, %s280
      %p286 = scmp.eq.s32.totalorder %s41, 0
      %p287 = por %p285, %p286
      %p288 = scmp.ne.s32.totalorder %s277, %s280
      %p289 = scmp.eq.s32.totalorder %s46, 1
      %p290 = por %p288, %p289
      %p291 = scmp.ne.s32.totalorder %s280, %s281
      %p292 = scmp.eq.s32.totalorder %s46, 0
      %p293 = por %p291, %p292
      %p294 = scmp.ne.s32.totalorder %s280, %s281
      %p295 = scmp.eq.s32.totalorder %s47, 1
      %p296 = por %p294, %p295
      %p298 = scmp.ne.s32.totalorder %s281, %s297
      %p299 = scmp.eq.s32.totalorder %s47, 0
      %p300 = por %p298, %p299
      %s301 = ssub.s32 %s49, %s56
      %p302 = scmp.eq.s32.totalorder %s301, 0
      %s304 = sadd.s32 %s303, 1
      %s305 = scalar_select %p302, %s303, %s304
      %p308 = pneg %p302
      %p309 = scmp.eq.s32.totalorder %s41, 1
      %p310 = por %p308, %p309
      %p311 = scmp.ne.s32.totalorder %s303, %s306
      %p312 = scmp.eq.s32.totalorder %s41, 0
      %p313 = por %p311, %p312
      %p314 = scmp.ne.s32.totalorder %s303, %s306
      %p315 = scmp.eq.s32.totalorder %s46, 1
      %p316 = por %p314, %p315
      %p317 = scmp.ne.s32.totalorder %s306, %s307
      %p318 = scmp.eq.s32.totalorder %s46, 0
      %p319 = por %p317, %p318
      %p320 = scmp.ne.s32.totalorder %s306, %s307
      %p321 = scmp.eq.s32.totalorder %s47, 1
      %p322 = por %p320, %p321
      %p324 = scmp.ne.s32.totalorder %s307, %s323
      %p325 = scmp.eq.s32.totalorder %s47, 0
      %p326 = por %p324, %p325
      %s327 = ssub.s32 %s49, %s56
      %p328 = scmp.eq.s32.totalorder %s327, 0
      %s330 = sadd.s32 %s329, 1
      %s331 = scalar_select %p328, %s329, %s330
      %p334 = pneg %p328
      %p335 = scmp.eq.s32.totalorder %s41, 1
      %p336 = por %p334, %p335
      %p337 = scmp.ne.s32.totalorder %s329, %s332
      %p338 = scmp.eq.s32.totalorder %s41, 0
      %p339 = por %p337, %p338
      %p340 = scmp.ne.s32.totalorder %s329, %s332
      %p341 = scmp.eq.s32.totalorder %s46, 1
      %p342 = por %p340, %p341
      %p343 = scmp.ne.s32.totalorder %s332, %s333
      %p344 = scmp.eq.s32.totalorder %s46, 0
      %p345 = por %p343, %p344
      %p346 = scmp.ne.s32.totalorder %s332, %s333
      %p347 = scmp.eq.s32.totalorder %s47, 1
      %p348 = por %p346, %p347
      %p350 = scmp.ne.s32.totalorder %s333, %s349
      %p351 = scmp.eq.s32.totalorder %s47, 0
      %p352 = por %p350, %p351
      %s353 = ssub.s32 %s49, %s56
      %p354 = scmp.eq.s32.totalorder %s353, 0
      %s356 = sadd.s32 %s355, 1
      %s357 = scalar_select %p354, %s355, %s356
      %p360 = pneg %p354
      %p361 = scmp.eq.s32.totalorder %s41, 1
      %p362 = por %p360, %p361
      %p363 = scmp.ne.s32.totalorder %s355, %s358
      %p364 = scmp.eq.s32.totalorder %s41, 0
      %p365 = por %p363, %p364
      %p366 = scmp.ne.s32.totalorder %s355, %s358
      %p367 = scmp.eq.s32.totalorder %s46, 1
      %p368 = por %p366, %p367
      %p369 = scmp.ne.s32.totalorder %s358, %s359
      %p370 = scmp.eq.s32.totalorder %s46, 0
      %p371 = por %p369, %p370
      %p372 = scmp.ne.s32.totalorder %s358, %s359
      %p373 = scmp.eq.s32.totalorder %s47, 1
      %p374 = por %p372, %p373
      %p376 = scmp.ne.s32.totalorder %s359, %s375
      %p377 = scmp.eq.s32.totalorder %s47, 0
      %p378 = por %p376, %p377
      %s380 = sadd.s32 %s379, 1
      %p383 = scmp.eq.s32.totalorder %s41, 1
      %p384 = scmp.ne.s32.totalorder %s379, %s381
      %p385 = scmp.eq.s32.totalorder %s41, 0
      %p386 = por %p384, %p385
      %p387 = scmp.ne.s32.totalorder %s379, %s381
      %p388 = scmp.eq.s32.totalorder %s46, 1
      %p389 = por %p387, %p388
      %p390 = scmp.ne.s32.totalorder %s381, %s382
      %p391 = scmp.eq.s32.totalorder %s46, 0
      %p392 = por %p390, %p391
      %p393 = scmp.ne.s32.totalorder %s381, %s382
      %p394 = scmp.eq.s32.totalorder %s47, 1
      %p395 = por %p393, %p394
      %p397 = scmp.ne.s32.totalorder %s382, %s396
      %p398 = scmp.eq.s32.totalorder %s47, 0
      %p399 = por %p397, %p398
      %s401 = sadd.s32 %s400, 1
      %p404 = scmp.eq.s32.totalorder %s41, 1
      %p405 = scmp.ne.s32.totalorder %s400, %s402
      %p406 = scmp.eq.s32.totalorder %s41, 0
      %p407 = por %p405, %p406
      %p408 = scmp.ne.s32.totalorder %s400, %s402
      %p409 = scmp.eq.s32.totalorder %s46, 1
      %p410 = por %p408, %p409
      %p411 = scmp.ne.s32.totalorder %s402, %s403
      %p412 = scmp.eq.s32.totalorder %s46, 0
      %p413 = por %p411, %p412
      %p414 = scmp.ne.s32.totalorder %s402, %s403
      %p415 = scmp.eq.s32.totalorder %s47, 1
      %p416 = por %p414, %p415
      %p418 = scmp.ne.s32.totalorder %s403, %s417
      %p419 = scmp.eq.s32.totalorder %s47, 0
      %p420 = por %p418, %p419
      %s422 = sadd.s32 %s421, 1
      %p425 = scmp.eq.s32.totalorder %s41, 1
      %p426 = scmp.ne.s32.totalorder %s421, %s423
      %p427 = scmp.eq.s32.totalorder %s41, 0
      %p428 = por %p426, %p427
      %p429 = scmp.ne.s32.totalorder %s421, %s423
      %p430 = scmp.eq.s32.totalorder %s46, 1
      %p431 = por %p429, %p430
      %p432 = scmp.ne.s32.totalorder %s423, %s424
      %p433 = scmp.eq.s32.totalorder %s46, 0
      %p434 = por %p432, %p433
      %p435 = scmp.ne.s32.totalorder %s423, %s424
      %p436 = scmp.eq.s32.totalorder %s47, 1
      %p437 = por %p435, %p436
      %p439 = scmp.ne.s32.totalorder %s424, %s438
      %p440 = scmp.eq.s32.totalorder %s47, 0
      %p441 = por %p439, %p440
      %s443 = sadd.s32 %s442, 1
      %p446 = scmp.eq.s32.totalorder %s41, 1
      %p447 = scmp.ne.s32.totalorder %s442, %s444
      %p448 = scmp.eq.s32.totalorder %s41, 0
      %p449 = por %p447, %p448
      %p450 = scmp.ne.s32.totalorder %s442, %s444
      %p451 = scmp.eq.s32.totalorder %s46, 1
      %p452 = por %p450, %p451
      %p453 = scmp.ne.s32.totalorder %s444, %s445
      %p454 = scmp.eq.s32.totalorder %s46, 0
      %p455 = por %p453, %p454
      %p456 = scmp.ne.s32.totalorder %s444, %s445
      %p457 = scmp.eq.s32.totalorder %s47, 1
      %p458 = por %p456, %p457
      %p460 = scmp.ne.s32.totalorder %s445, %s459
      %p461 = scmp.eq.s32.totalorder %s47, 0
      %p462 = por %p460, %p461
      %s463 = ssub.s32 %s48, %s60
      %p464 = scmp.eq.s32.totalorder %s463, 0
      %s466 = sadd.s32 %s465, 1
      %s467 = scalar_select %p464, %s465, %s466
      %p470 = pneg %p464
      %p471 = scmp.eq.s32.totalorder %s41, 1
      %p472 = por %p470, %p471
      %p473 = scmp.ne.s32.totalorder %s465, %s468
      %p474 = scmp.eq.s32.totalorder %s41, 0
      %p475 = por %p473, %p474
      %p476 = scmp.ne.s32.totalorder %s465, %s468
      %p477 = scmp.eq.s32.totalorder %s46, 1
      %p478 = por %p476, %p477
      %p479 = scmp.ne.s32.totalorder %s468, %s469
      %p480 = scmp.eq.s32.totalorder %s46, 0
      %p481 = por %p479, %p480
      %p482 = scmp.ne.s32.totalorder %s468, %s469
      %p483 = scmp.eq.s32.totalorder %s47, 1
      %p484 = por %p482, %p483
      %p486 = scmp.ne.s32.totalorder %s469, %s485
      %p487 = scmp.eq.s32.totalorder %s47, 0
      %p488 = por %p486, %p487
      %s489 = ssub.s32 %s49, %s56
      %s490 = ssub.s32 %s48, %s60
      %s491 = sor.u32 %s489, %s490
      %p492 = scmp.eq.s32.totalorder %s491, 0
      %s494 = sadd.s32 %s493, 1
      %s495 = scalar_select %p492, %s493, %s494
      %p498 = pneg %p492
      %p499 = scmp.eq.s32.totalorder %s41, 1
      %p500 = por %p498, %p499
      %p501 = scmp.ne.s32.totalorder %s493, %s496
      %p502 = scmp.eq.s32.totalorder %s41, 0
      %p503 = por %p501, %p502
      %p504 = scmp.ne.s32.totalorder %s493, %s496
      %p505 = scmp.eq.s32.totalorder %s46, 1
      %p506 = por %p504, %p505
      %p507 = scmp.ne.s32.totalorder %s496, %s497
      %p508 = scmp.eq.s32.totalorder %s46, 0
      %p509 = por %p507, %p508
      %p510 = scmp.ne.s32.totalorder %s496, %s497
      %p511 = scmp.eq.s32.totalorder %s47, 1
      %p512 = por %p510, %p511
      %p514 = scmp.ne.s32.totalorder %s497, %s513
      %p515 = scmp.eq.s32.totalorder %s47, 0
      %p516 = por %p514, %p515
      %p517 = scmp.le.s32.totalorder 1, %s41
      %p518 = scmp.lt.s32.totalorder %s41, 3
      %p519 = pnand %p517, %p518
      %p520 = pneg %p519
      // Predicated region
      $region9: #{tpu_custom_call.1} parent=5 // pred_check
        _
      $region10: #{tpu_custom_call.1} parent=5 // pred_check_branch
        %522 = sbr.rel (%p519) target = $region12
      $region11: #{tpu_custom_call.1} parent=5 // pred_region
        %s523 = ssub.s32 %s41, 1
        // Predicated region
        $region13: #{tpu_custom_call.1} parent=11 // pred_check
          %p524 = pneg %p79
        $region14: #{tpu_custom_call.1} parent=11 // pred_check_branch
          %526 = sbr.rel (%p524) target = $region16
        $region15: #{tpu_custom_call.1} parent=11 // pred_region
          %s527 = smul.u32 2, %s50
          %s529 = ssub.s32 256, 256
          %530 = vsyncadd [#allocation8], %s529
          %s531 = smul.addr %s527, 128
          %s532 = scalar_lea.hbm %s0, %s531
          %s533 = sshll.u32 [#allocation7], 4
          %s534 = int_to_ptr.vmem [resolvable:$true] %s533
          %539 = dma.hbm_to_vmem [thread:$0]  %s532, 256, %s534, [#allocation8], 128, 128, 8
        $region16: #{tpu_custom_call.1} parent=11 // pred_fallthru
          _
        // Predicated region
        $region17: #{tpu_custom_call.1} parent=11 // pred_check
          %p540 = pneg %p105
        $region18: #{tpu_custom_call.1} parent=11 // pred_check_branch
          %542 = sbr.rel (%p540) target = $region20
        $region19: #{tpu_custom_call.1} parent=11 // pred_region
          %s543 = smul.u32 2, %s50
          %s545 = ssub.s32 256, 256
          %546 = vsyncadd [#allocation11], %s545
          %s547 = smul.addr %s543, 128
          %s548 = scalar_lea.hbm %s1, %s547
          %s549 = sshll.u32 [#allocation10], 4
          %s550 = int_to_ptr.vmem [resolvable:$true] %s549
          %555 = dma.hbm_to_vmem [thread:$0]  %s548, 256, %s550, [#allocation11], 128, 128, 8
        $region20: #{tpu_custom_call.1} parent=11 // pred_fallthru
          _
        // Predicated region
        $region21: #{tpu_custom_call.1} parent=11 // pred_check
          %p556 = pneg %p126
        $region22: #{tpu_custom_call.1} parent=11 // pred_check_branch
          %558 = sbr.rel (%p556) target = $region24
        $region23: #{tpu_custom_call.1} parent=11 // pred_region
          %s560 = ssub.s32 256, 256
          %561 = vsyncadd [#allocation11], %s560
          %s562 = sshll.u32 [#allocation12], 4
          %s563 = int_to_ptr.vmem [resolvable:$true] %s562
          %568 = dma.hbm_to_vmem [thread:$0]  %s2, 256, %s563, [#allocation11], 64, 64, 4
        $region24: #{tpu_custom_call.1} parent=11 // pred_fallthru
          _
        // Predicated region
        $region25: #{tpu_custom_call.1} parent=11 // pred_check
          %p569 = pneg %p147
        $region26: #{tpu_custom_call.1} parent=11 // pred_check_branch
          %571 = sbr.rel (%p569) target = $region28
        $region27: #{tpu_custom_call.1} parent=11 // pred_region
          _
        $region28: #{tpu_custom_call.1} parent=11 // pred_fallthru
          _
        // Predicated region
        $region29: #{tpu_custom_call.1} parent=11 // pred_check
          %p572 = pneg %p168
        $region30: #{tpu_custom_call.1} parent=11 // pred_check_branch
          %574 = sbr.rel (%p572) target = $region32
        $region31: #{tpu_custom_call.1} parent=11 // pred_region
          %s576 = ssub.s32 256, 256
          %577 = vsyncadd [#allocation14], %s576
          %s578 = sshll.u32 [#allocation13], 4
          %s579 = int_to_ptr.vmem [resolvable:$true] %s578
          %584 = dma.hbm_to_vmem [thread:$0]  %s4, 256, %s579, [#allocation14], 64, 64, 4
        $region32: #{tpu_custom_call.1} parent=11 // pred_fallthru
          _
        // Predicated region
        $region33: #{tpu_custom_call.1} parent=11 // pred_check
          %p585 = pneg %p189
        $region34: #{tpu_custom_call.1} parent=11 // pred_check_branch
          %587 = sbr.rel (%p585) target = $region36
        $region35: #{tpu_custom_call.1} parent=11 // pred_region
          %s589 = ssub.s32 16, 16
          %590 = vsyncadd [#allocation14], %s589
          %s592 = sshll.u32 [#allocation15], 4
          %s593 = int_to_ptr.vmem [resolvable:$true] %s592
          %595 = dma.hbm_to_vmem [thread:$0]  %s5, 16, %s593, [#allocation14]
        $region36: #{tpu_custom_call.1} parent=11 // pred_fallthru
          _
        // Predicated region
        $region37: #{tpu_custom_call.1} parent=11 // pred_check
          %p596 = pneg %p392
        $region38: #{tpu_custom_call.1} parent=11 // pred_check_branch
          %598 = sbr.rel (%p596) target = $region40
        $region39: #{tpu_custom_call.1} parent=11 // pred_region
          _
        $region40: #{tpu_custom_call.1} parent=11 // pred_fallthru
          _
        // Predicated region
        $region41: #{tpu_custom_call.1} parent=11 // pred_check
          %p599 = pneg %p413
        $region42: #{tpu_custom_call.1} parent=11 // pred_check_branch
          %601 = sbr.rel (%p599) target = $region44
        $region43: #{tpu_custom_call.1} parent=11 // pred_region
          _
        $region44: #{tpu_custom_call.1} parent=11 // pred_fallthru
          _
        // Predicated region
        $region45: #{tpu_custom_call.1} parent=11 // pred_check
          %p602 = pneg %p434
        $region46: #{tpu_custom_call.1} parent=11 // pred_check_branch
          %604 = sbr.rel (%p602) target = $region48
        $region47: #{tpu_custom_call.1} parent=11 // pred_region
          _
        $region48: #{tpu_custom_call.1} parent=11 // pred_fallthru
          _
        // Predicated region
        $region49: #{tpu_custom_call.1} parent=11 // pred_check
          %p605 = pneg %p455
        $region50: #{tpu_custom_call.1} parent=11 // pred_check_branch
          %607 = sbr.rel (%p605) target = $region52
        $region51: #{tpu_custom_call.1} parent=11 // pred_region
          _
        $region52: #{tpu_custom_call.1} parent=11 // pred_fallthru
          _
      $region12: #{tpu_custom_call.1} parent=5 // pred_fallthru
        _
      %p608 = scmp.lt.s32.totalorder %s41, 2
      // Predicated region
      $region53: #{tpu_custom_call.1} parent=5 // pred_check
        %p609 = pneg %p608
      $region54: #{tpu_custom_call.1} parent=5 // pred_check_branch
        %611 = sbr.rel (%p609) target = $region56
      $region55: #{tpu_custom_call.1} parent=5 // pred_region
        // Predicated region
        $region57: #{tpu_custom_call.1} parent=55 // pred_check
          %p612 = pneg %p209
        $region58: #{tpu_custom_call.1} parent=55 // pred_check_branch
          %614 = sbr.rel (%p612) target = $region60
        $region59: #{tpu_custom_call.1} parent=55 // pred_region
          %s615 = sand.u32 %s41, 1
          %s616 = scalar_lea.sflag [#allocation17], %s615
          %s617 = sand.u32 %s199, 1
          %s618 = scalar_lea.vmem [#allocation16], %s617
          %s620 = ssub.s32 16, 16
          %621 = vsyncadd %s616, %s620
          %s622 = smul.addr %s49, 16
          %s623 = scalar_lea.hbm %s6, %s622
          %s625 = sshll.u32 %s618, 4
          %s626 = int_to_ptr.vmem [resolvable:$true] %s625
          %628 = dma.hbm_to_vmem [thread:$0]  %s623, 16, %s626, %s616
        $region60: #{tpu_custom_call.1} parent=55 // pred_fallthru
          _
        // Predicated region
        $region61: #{tpu_custom_call.1} parent=55 // pred_check
          %p629 = pneg %p235
        $region62: #{tpu_custom_call.1} parent=55 // pred_check_branch
          %631 = sbr.rel (%p629) target = $region64
        $region63: #{tpu_custom_call.1} parent=55 // pred_region
          %p632 = scmp.lt.s32.totalorder %s49, 1
          %s633 = scalar_select %p632, %s49, 1
          %s634 = smul.addr %s633, 4
          %s635 = smul.addr %s634, 4
          %s636 = scalar_lea.vmem %s7, %s635
        $region64: #{tpu_custom_call.1} parent=55 // pred_fallthru
          _
        // Predicated region
        $region65: #{tpu_custom_call.1} parent=55 // pred_check
          %p637 = pneg %p261
        $region66: #{tpu_custom_call.1} parent=55 // pred_check_branch
          %639 = sbr.rel (%p637) target = $region68
        $region67: #{tpu_custom_call.1} parent=55 // pred_region
          %s640 = sand.u32 %s41, 1
          %s641 = scalar_lea.sflag [#allocation17], %s640
          %s642 = sand.u32 %s251, 1
          %s643 = scalar_lea.vmem [#allocation18], %s642
          %s645 = ssub.s32 16, 16
          %646 = vsyncadd %s641, %s645
          %s647 = smul.addr %s49, 16
          %s648 = scalar_lea.hbm %s8, %s647
          %s650 = sshll.u32 %s643, 4
          %s651 = int_to_ptr.vmem [resolvable:$true] %s650
          %653 = dma.hbm_to_vmem [thread:$0]  %s648, 16, %s651, %s641
        $region68: #{tpu_custom_call.1} parent=55 // pred_fallthru
          _
        // Predicated region
        $region69: #{tpu_custom_call.1} parent=55 // pred_check
          %p654 = pneg %p287
        $region70: #{tpu_custom_call.1} parent=55 // pred_check_branch
          %656 = sbr.rel (%p654) target = $region72
        $region71: #{tpu_custom_call.1} parent=55 // pred_region
          %p657 = scmp.lt.s32.totalorder %s49, 1
          %s658 = scalar_select %p657, %s49, 1
          %s659 = smul.addr %s658, 4
          %s660 = smul.addr %s659, 4
          %s661 = scalar_lea.vmem %s9, %s660
        $region72: #{tpu_custom_call.1} parent=55 // pred_fallthru
          _
        // Predicated region
        $region73: #{tpu_custom_call.1} parent=55 // pred_check
          %p662 = pneg %p313
        $region74: #{tpu_custom_call.1} parent=55 // pred_check_branch
          %664 = sbr.rel (%p662) target = $region76
        $region75: #{tpu_custom_call.1} parent=55 // pred_region
          %s665 = sand.u32 %s41, 1
          %s666 = scalar_lea.sflag [#allocation20], %s665
          %s667 = sand.u32 %s303, 1
          %s668 = scalar_lea.vmem [#allocation19], %s667
          %s670 = ssub.s32 16, 16
          %671 = vsyncadd %s666, %s670
          %s672 = smul.addr %s49, 16
          %s673 = scalar_lea.hbm %s10, %s672
          %s675 = sshll.u32 %s668, 4
          %s676 = int_to_ptr.vmem [resolvable:$true] %s675
          %678 = dma.hbm_to_vmem [thread:$0]  %s673, 16, %s676, %s666
        $region76: #{tpu_custom_call.1} parent=55 // pred_fallthru
          _
        // Predicated region
        $region77: #{tpu_custom_call.1} parent=55 // pred_check
          %p679 = pneg %p339
        $region78: #{tpu_custom_call.1} parent=55 // pred_check_branch
          %681 = sbr.rel (%p679) target = $region80
        $region79: #{tpu_custom_call.1} parent=55 // pred_region
          %s682 = sand.u32 %s41, 1
          %s683 = scalar_lea.sflag [#allocation20], %s682
          %s684 = sand.u32 %s329, 1
          %s685 = smul.addr %s684, 16
          %s686 = scalar_lea.vmem [#allocation21], %s685
          %s688 = ssub.s32 256, 256
          %689 = vsyncadd %s683, %s688
          %s690 = smul.addr %s49, 4
          %s691 = smul.addr %s690, 64
          %s692 = scalar_lea.hbm %s11, %s691
          %s693 = sshll.u32 %s686, 4
          %s694 = int_to_ptr.vmem [resolvable:$true] %s693
          %699 = dma.hbm_to_vmem [thread:$0]  %s692, 256, %s694, %s683, 64, 64, 4
        $region80: #{tpu_custom_call.1} parent=55 // pred_fallthru
          _
        // Predicated region
        $region81: #{tpu_custom_call.1} parent=55 // pred_check
          %p700 = pneg %p365
        $region82: #{tpu_custom_call.1} parent=55 // pred_check_branch
          %702 = sbr.rel (%p700) target = $region84
        $region83: #{tpu_custom_call.1} parent=55 // pred_region
          %s703 = sand.u32 %s355, 1
          %s704 = scalar_lea.sflag [#allocation23], %s703
          %s705 = sand.u32 %s355, 1
          %s706 = scalar_lea.vmem [#allocation22], %s705
          %s708 = ssub.s32 16, 16
          %709 = vsyncadd %s704, %s708
          %s710 = smul.addr %s49, 16
          %s711 = scalar_lea.hbm %s12, %s710
          %s713 = sshll.u32 %s706, 4
          %s714 = int_to_ptr.vmem [resolvable:$true] %s713
          %716 = dma.hbm_to_vmem [thread:$0]  %s711, 16, %s714, %s704
        $region84: #{tpu_custom_call.1} parent=55 // pred_fallthru
          _
      $region56: #{tpu_custom_call.1} parent=5 // pred_fallthru
        _
      %p717 = scmp.le.s32.totalorder 1, %s41
      %p718 = scmp.lt.s32.totalorder %s41, 3
      %p719 = pnand %p717, %p718
      %p720 = pneg %p719
      // Predicated region
      $region85: #{tpu_custom_call.1} parent=5 // pred_check
        _
      $region86: #{tpu_custom_call.1} parent=5 // pred_check_branch
        %722 = sbr.rel (%p719) target = $region88
      $region87: #{tpu_custom_call.1} parent=5 // pred_region
        %s723 = ssub.s32 %s41, 1
        // Predicated region
        $region89: #{tpu_custom_call.1} parent=87 // pred_check
          %p724 = pneg %p79
        $region90: #{tpu_custom_call.1} parent=87 // pred_check_branch
          %726 = sbr.rel (%p724) target = $region92
        $region91: #{tpu_custom_call.1} parent=87 // pred_region
          %727 = dma.done [#allocation8], 256
        $region92: #{tpu_custom_call.1} parent=87 // pred_fallthru
          _
        // Predicated region
        $region93: #{tpu_custom_call.1} parent=87 // pred_check
          %p728 = pneg %p105
        $region94: #{tpu_custom_call.1} parent=87 // pred_check_branch
          %730 = sbr.rel (%p728) target = $region96
        $region95: #{tpu_custom_call.1} parent=87 // pred_region
          %731 = dma.done [#allocation11], 256
        $region96: #{tpu_custom_call.1} parent=87 // pred_fallthru
          _
        // Predicated region
        $region97: #{tpu_custom_call.1} parent=87 // pred_check
          %p732 = pneg %p126
        $region98: #{tpu_custom_call.1} parent=87 // pred_check_branch
          %734 = sbr.rel (%p732) target = $region100
        $region99: #{tpu_custom_call.1} parent=87 // pred_region
          %735 = dma.done [#allocation11], 256
        $region100: #{tpu_custom_call.1} parent=87 // pred_fallthru
          _
        // Predicated region
        $region101: #{tpu_custom_call.1} parent=87 // pred_check
          %p736 = pneg %p168
        $region102: #{tpu_custom_call.1} parent=87 // pred_check_branch
          %738 = sbr.rel (%p736) target = $region104
        $region103: #{tpu_custom_call.1} parent=87 // pred_region
          %739 = dma.done [#allocation14], 256
        $region104: #{tpu_custom_call.1} parent=87 // pred_fallthru
          _
        // Predicated region
        $region105: #{tpu_custom_call.1} parent=87 // pred_check
          %p740 = pneg %p189
        $region106: #{tpu_custom_call.1} parent=87 // pred_check_branch
          %742 = sbr.rel (%p740) target = $region108
        $region107: #{tpu_custom_call.1} parent=87 // pred_region
          %743 = dma.done [#allocation14], 16
        $region108: #{tpu_custom_call.1} parent=87 // pred_fallthru
          _
        %s744 = sand.u32 %s46, 1
        %s745 = scalar_lea.sflag [#allocation17], %s744
        %s746 = sand.u32 %s202, 1
        %s747 = scalar_lea.vmem [#allocation16], %s746
        // Predicated region
        $region109: #{tpu_custom_call.1} parent=87 // pred_check
          %p748 = pneg %p215
        $region110: #{tpu_custom_call.1} parent=87 // pred_check_branch
          %750 = sbr.rel (%p748) target = $region112
        $region111: #{tpu_custom_call.1} parent=87 // pred_region
          %751 = dma.done %s745, 16
        $region112: #{tpu_custom_call.1} parent=87 // pred_fallthru
          _
        %s752 = sand.u32 %s46, 1
        %s753 = scalar_lea.sflag [#allocation17], %s752
        %s754 = sand.u32 %s254, 1
        %s755 = scalar_lea.vmem [#allocation18], %s754
        // Predicated region
        $region113: #{tpu_custom_call.1} parent=87 // pred_check
          %p756 = pneg %p267
        $region114: #{tpu_custom_call.1} parent=87 // pred_check_branch
          %758 = sbr.rel (%p756) target = $region116
        $region115: #{tpu_custom_call.1} parent=87 // pred_region
          %759 = dma.done %s753, 16
        $region116: #{tpu_custom_call.1} parent=87 // pred_fallthru
          _
        %s760 = sand.u32 %s46, 1
        %s761 = scalar_lea.sflag [#allocation20], %s760
        %s762 = sand.u32 %s306, 1
        %s763 = scalar_lea.vmem [#allocation19], %s762
        // Predicated region
        $region117: #{tpu_custom_call.1} parent=87 // pred_check
          %p764 = pneg %p319
        $region118: #{tpu_custom_call.1} parent=87 // pred_check_branch
          %766 = sbr.rel (%p764) target = $region120
        $region119: #{tpu_custom_call.1} parent=87 // pred_region
          %767 = dma.done %s761, 16
        $region120: #{tpu_custom_call.1} parent=87 // pred_fallthru
          _
        %s768 = sand.u32 %s46, 1
        %s769 = scalar_lea.sflag [#allocation20], %s768
        %s770 = sand.u32 %s332, 1
        %s771 = smul.addr %s770, 16
        %s772 = scalar_lea.vmem [#allocation21], %s771
        // Predicated region
        $region121: #{tpu_custom_call.1} parent=87 // pred_check
          %p773 = pneg %p345
        $region122: #{tpu_custom_call.1} parent=87 // pred_check_branch
          %775 = sbr.rel (%p773) target = $region124
        $region123: #{tpu_custom_call.1} parent=87 // pred_region
          %776 = dma.done %s769, 256
        $region124: #{tpu_custom_call.1} parent=87 // pred_fallthru
          _
        %s777 = sand.u32 %s358, 1
        %s778 = scalar_lea.sflag [#allocation23], %s777
        %s779 = sand.u32 %s358, 1
        %s780 = scalar_lea.vmem [#allocation22], %s779
        // Predicated region
        $region125: #{tpu_custom_call.1} parent=87 // pred_check
          %p781 = pneg %p371
        $region126: #{tpu_custom_call.1} parent=87 // pred_check_branch
          %783 = sbr.rel (%p781) target = $region128
        $region127: #{tpu_custom_call.1} parent=87 // pred_region
          %784 = dma.done %s778, 16
        $region128: #{tpu_custom_call.1} parent=87 // pred_fallthru
          _
        %p785 = pneg %p79
        %p786 = pneg %p76
        %p787 = pneg %p105
        %p788 = pneg %p102
        %p789 = pneg %p126
        %p790 = pneg %p123
        %p791 = pneg %p147
        %p792 = pneg %p144
        %p793 = pneg %p168
        %p794 = pneg %p165
        %p795 = pneg %p189
        %p796 = pneg %p186
        %s797 = sand.u32 %s46, 1
        %s798 = scalar_lea.sflag [#allocation17], %s797
        %s799 = sand.u32 %s202, 1
        %s800 = scalar_lea.vmem [#allocation16], %s799
        %p801 = pneg %p215
        %p802 = pneg %p212
        %p803 = scmp.lt.s32.totalorder %s51, 1
        %s804 = scalar_select %p803, %s51, 1
        %s805 = smul.addr %s804, 4
        %s806 = smul.addr %s805, 4
        %s807 = scalar_lea.vmem %s7, %s806
        %p808 = pneg %p241
        %p809 = pneg %p238
        %s810 = sand.u32 %s46, 1
        %s811 = scalar_lea.sflag [#allocation17], %s810
        %s812 = sand.u32 %s254, 1
        %s813 = scalar_lea.vmem [#allocation18], %s812
        %p814 = pneg %p267
        %p815 = pneg %p264
        %p816 = scmp.lt.s32.totalorder %s51, 1
        %s817 = scalar_select %p816, %s51, 1
        %s818 = smul.addr %s817, 4
        %s819 = smul.addr %s818, 4
        %s820 = scalar_lea.vmem %s9, %s819
        %p821 = pneg %p293
        %p822 = pneg %p290
        %s823 = sand.u32 %s46, 1
        %s824 = scalar_lea.sflag [#allocation20], %s823
        %s825 = sand.u32 %s306, 1
        %s826 = scalar_lea.vmem [#allocation19], %s825
        %p827 = pneg %p319
        %p828 = pneg %p316
        %s829 = sand.u32 %s46, 1
        %s830 = scalar_lea.sflag [#allocation20], %s829
        %s831 = sand.u32 %s332, 1
        %s832 = smul.addr %s831, 16
        %s833 = scalar_lea.vmem [#allocation21], %s832
        %p834 = pneg %p345
        %p835 = pneg %p342
        %s836 = sand.u32 %s358, 1
        %s837 = scalar_lea.sflag [#allocation23], %s836
        %s838 = sand.u32 %s358, 1
        %s839 = scalar_lea.vmem [#allocation22], %s838
        %p840 = pneg %p371
        %p841 = pneg %p368
        %p842 = pneg %p392
        %p843 = pneg %p389
        %p844 = pneg %p413
        %p845 = pneg %p410
        %p846 = pneg %p434
        %p847 = pneg %p431
        %p848 = pneg %p455
        %p849 = pneg %p452
        %p850 = pneg %p481
        %p851 = pneg %p478
        %p852 = pneg %p509
        %p853 = pneg %p506
        %s854 = sand.u32 %s496, 1
        %s855 = scalar_lea.sflag [#allocation26], %s854
        %s856 = sand.u32 %s496, 1
        %s857 = smul.addr %s856, 16
        %s858 = scalar_lea.vmem [#allocation25], %s857
        %s859 = smul.u32 2, %s50
        %s860 = smul.u32 2, %s50
        %p861 = scmp.lt.s32.totalorder %s51, 1
        %s862 = scalar_select %p861, %s51, 1
        %s863 = smul.addr %s862, 4
        %s864 = smul.addr %s863, 4
        %s865 = scalar_lea.vmem %s7, %s864
        %p866 = scmp.lt.s32.totalorder %s51, 1
        %s867 = scalar_select %p866, %s51, 1
        %s868 = smul.addr %s867, 4
        %s869 = smul.addr %s868, 4
        %s870 = scalar_lea.vmem %s9, %s869
        %s871 = smul.u32 2, %s50
        %p873 = scmp.eq.s32.totalorder %s51, 0
        // Predicated region
        $region129: #{tpu_custom_call.1} parent=87 // pred_check
          %p874 = pneg %p873
        $region130: #{tpu_custom_call.1} parent=87 // pred_check_branch
          %876 = sbr.rel (%p874) target = $region132
        $region131: #{tpu_custom_call.1} parent=87 // pred_region
          %v877 = vld [vmem:[#allocation7] sm:$0xff]
          %v878 = vld [vmem:[#allocation7 + $0x8] sm:$0xff]
          %v879 = vpack.c.bf16 %v878, %v877
          %v880 = vld [vmem:[#allocation10] sm:$0xff]
          %v881 = vld [vmem:[#allocation10 + $0x8] sm:$0xff]
          %v882 = vpack.c.bf16 %v881, %v880
          %v883 = vld [vmem:[#allocation12] sm:$0xf]
          %v884 = vld [vmem:[#allocation12 + $0x4] sm:$0xf]
          %v885 = vld [vmem:[#allocation12 + $0x8] sm:$0xf]
          %v886 = vld [vmem:[#allocation12 + $0xc] sm:$0xf]
          %v887 = vld [vmem:[%s3] sm:$0x1]
          %v889 = vlaneseq
          %v890 = vshrl.u32 %v889, 7
          %v891 = vsub.s32 0, %v890
          %v892 = vrot.slane %v887, %v891
          %v898 = vunpack.c.l.b16 %v883
          %v899 = vunpack.c.l.b16 %v884
          %v900 = vunpack.c.l.b16 %v885
          %v901 = vunpack.c.l.b16 %v886
          %v902 = vpack.c.b16 %v899, %v898
          %v903 = vpack.c.b16 %v901, %v900
          %vm906 = vcmask 261120
          %v908 = vsel %vm906, %v879, 0
          %910 = vmatprep.subr.bf16.mxu0 0
          %911 = vmatpush1.bf16.msra.mxu0 %v902
          %912 = vmatprep.subr.bf16.mxu0 0
          %913 = vmatpush1.bf16.msra.mxu0 %v903
          %914 = vmatprep.subr.bf16.mxu0 0
          %915 = vmatpush1.bf16.msra.mxu0 0
          %916 = vmatprep.subr.bf16.mxu0 0
          %917 = vmatpush1.bf16.msra.mxu0 0
          %918 = vmatprep.subr.bf16.mxu0 0
          %919 = vmatpush1.bf16.msra.mxu0 0
          %920 = vmatprep.subr.bf16.mxu0 0
          %921 = vmatpush1.bf16.msra.mxu0 0
          %922 = vmatprep.subr.bf16.mxu0 0
          %923 = vmatpush1.bf16.msra.mxu0 0
          %924 = vmatprep.subr.bf16.mxu0 0
          %925 = vmatpush1.bf16.msra.mxu0 0
          %926 = vmatprep.subr.bf16.mxu0 0
          %927 = vmatpush1.bf16.msra.mxu0 0
          %928 = vmatprep.subr.bf16.mxu0 0
          %929 = vmatpush1.bf16.msra.mxu0 0
          %930 = vmatprep.subr.bf16.mxu0 0
          %931 = vmatpush1.bf16.msra.mxu0 0
          %932 = vmatprep.subr.bf16.mxu0 0
          %933 = vmatpush1.bf16.msra.mxu0 0
          %934 = vmatprep.subr.bf16.mxu0 0
          %935 = vmatpush1.bf16.msra.mxu0 0
          %936 = vmatprep.subr.bf16.mxu0 0
          %937 = vmatpush1.bf16.msra.mxu0 0
          %938 = vmatprep.subr.bf16.mxu0 0
          %939 = vmatpush1.bf16.msra.mxu0 0
          %940 = vmatprep.subr.bf16.mxu0 0
          %941 = vmatpush1.bf16.msra.mxu0 0
          %942 = vmatprep.mubr.bf16.mxu0 0
          %943 = vmatmul.mubr.bf16.gmra.mrb[0].mxu0 %v908
          %v944 = vpop.f32.mrb[0].mxu0
          %v945 = vadd.f32 %v892, %v944
          %v946 = vpop.f32.mrb[0].mxu0
          %v947 = vpop.f32.mrb[0].mxu0
          %v948 = vadd.f32 %v892, %v947
          %v949 = vpop.f32.mrb[0].mxu0
          %950 = vdwg.mxu0
          %v951 = vmax.f32 %v945, 0.0
          %v952 = vmax.f32 %v948, 0.0
          %vm953 = vcmask 785408
          %954 = vst.msk [vmem:[#allocation2] sm:$0xff] %vm953, %v951
          %955 = vst.msk [vmem:[#allocation2 + $0x8] sm:$0xff] %vm953, %v952
          %v956 = vld [vmem:[#allocation13] sm:$0xf]
          %v957 = vld [vmem:[#allocation13 + $0x4] sm:$0xf]
          %v958 = vld [vmem:[#allocation13 + $0x8] sm:$0xf]
          %v959 = vld [vmem:[#allocation13 + $0xc] sm:$0xf]
          %v960 = vld [vmem:[#allocation15] sm:$0x1]
          %v962 = vlaneseq
          %v963 = vshrl.u32 %v962, 7
          %v964 = vsub.s32 0, %v963
          %v965 = vrot.slane %v960, %v964
          %v971 = vunpack.c.l.b16 %v956
          %v972 = vunpack.c.l.b16 %v957
          %v973 = vunpack.c.l.b16 %v958
          %v974 = vunpack.c.l.b16 %v959
          %v975 = vpack.c.b16 %v972, %v971
          %v976 = vpack.c.b16 %v974, %v973
          %v980 = vsel %vm906, %v882, 0
          %982 = vmatprep.subr.bf16.mxu0 0
          %983 = vmatpush1.bf16.msra.mxu0 %v975
          %984 = vmatprep.subr.bf16.mxu0 0
          %985 = vmatpush1.bf16.msra.mxu0 %v976
          %986 = vmatprep.subr.bf16.mxu0 0
          %987 = vmatpush1.bf16.msra.mxu0 0
          %988 = vmatprep.subr.bf16.mxu0 0
          %989 = vmatpush1.bf16.msra.mxu0 0
          %990 = vmatprep.subr.bf16.mxu0 0
          %991 = vmatpush1.bf16.msra.mxu0 0
          %992 = vmatprep.subr.bf16.mxu0 0
          %993 = vmatpush1.bf16.msra.mxu0 0
          %994 = vmatprep.subr.bf16.mxu0 0
          %995 = vmatpush1.bf16.msra.mxu0 0
          %996 = vmatprep.subr.bf16.mxu0 0
          %997 = vmatpush1.bf16.msra.mxu0 0
          %998 = vmatprep.subr.bf16.mxu0 0
          %999 = vmatpush1.bf16.msra.mxu0 0
          %1000 = vmatprep.subr.bf16.mxu0 0
          %1001 = vmatpush1.bf16.msra.mxu0 0
          %1002 = vmatprep.subr.bf16.mxu0 0
          %1003 = vmatpush1.bf16.msra.mxu0 0
          %1004 = vmatprep.subr.bf16.mxu0 0
          %1005 = vmatpush1.bf16.msra.mxu0 0
          %1006 = vmatprep.subr.bf16.mxu0 0
          %1007 = vmatpush1.bf16.msra.mxu0 0
          %1008 = vmatprep.subr.bf16.mxu0 0
          %1009 = vmatpush1.bf16.msra.mxu0 0
          %1010 = vmatprep.subr.bf16.mxu0 0
          %1011 = vmatpush1.bf16.msra.mxu0 0
          %1012 = vmatprep.subr.bf16.mxu0 0
          %1013 = vmatpush1.bf16.msra.mxu0 0
          %1014 = vmatprep.mubr.bf16.mxu0 0
          %1015 = vmatmul.mubr.bf16.gmra.mrb[0].mxu0 %v980
          %v1016 = vpop.f32.mrb[0].mxu0
          %v1017 = vadd.f32 %v965, %v1016
          %v1018 = vpop.f32.mrb[0].mxu0
          %v1019 = vpop.f32.mrb[0].mxu0
          %v1020 = vadd.f32 %v965, %v1019
          %v1021 = vpop.f32.mrb[0].mxu0
          %1022 = vdwg.mxu0
          %v1023 = vmax.f32 %v1017, 0.0
          %v1024 = vmax.f32 %v1020, 0.0
          %1025 = vst.msk [vmem:[#allocation3] sm:$0xff] %vm953, %v1023
          %1026 = vst.msk [vmem:[#allocation3 + $0x8] sm:$0xff] %vm953, %v1024
          %v1027 = vld [vmem:[#allocation7] sm:$0xff]
          %v1028 = vld [vmem:[#allocation7 + $0x8] sm:$0xff]
          %v1029 = vand.u32 2147483647, %v1027
          %v1030 = vand.u32 2147483647, %v1028
          %v1031 = vsel %vm906, %v1029, 0.0
          %1032 = vadd.xlane.f32.xlu0 %v1031
          %v1033 = vpop.xlane.xlu0 %1032
          %v1034 = vsel %vm906, %v1030, 0.0
          %1035 = vadd.xlane.f32.xlu0 %v1034
          %v1036 = vpop.xlane.xlu0 %1035
          %vm1037 = vcmp.eq.f32.partialorder %v1033, 0.0
          %vm1038 = vcmp.eq.f32.partialorder %v1036, 0.0
          %v1039 = vsel %vm1037, -inf, 0.0
          %v1040 = vsel %vm1038, -inf, 0.0
          %vm1041 = vcmask 7168
          %1042 = vst.msk [vmem:[#allocation4] sm:$0xff] %vm1041, %v1039
          %1043 = vst.msk [vmem:[#allocation4 + $0x8] sm:$0xff] %vm1041, %v1040
          %v1044 = vld [vmem:[#allocation10] sm:$0xff]
          %v1045 = vld [vmem:[#allocation10 + $0x8] sm:$0xff]
          %1046 = vst.msk [vmem:[#allocation5] sm:$0xff] %vm906, %v1044
          %1047 = vst.msk [vmem:[#allocation5 + $0x8] sm:$0xff] %vm906, %v1045
          %vm1048 = vcmask 254976
          %1049 = vst.msk [vmem:[#allocation6] sm:$0x3] %vm1048, 0.0
        $region132: #{tpu_custom_call.1} parent=87 // pred_fallthru
          _
        %v1050 = vld [vmem:[#allocation2] sm:$0xff]
        %v1051 = vld [vmem:[#allocation2 + $0x8] sm:$0xff]
        %v1052 = vld [vmem:[%s747] sm:$0x1]
        %v1054 = vlaneseq
        %v1055 = vshrl.u32 %v1054, 7
        %v1056 = vsub.s32 0, %v1055
        %v1057 = vrot.slane %v1052, %v1056
        %v1059 = vmul.f32 %v1050, %v1057
        %v1060 = vmul.f32 %v1051, %v1057
        %v1061 = vpack.c.bf16 %v1059, %v1059
        %v1062 = vpack.c.bf16 %v1060, %v1060
        %v1063 = vld [vmem:[#allocation3] sm:$0xff]
        %v1064 = vld [vmem:[#allocation3 + $0x8] sm:$0xff]
        %v1065 = vpack.c.bf16 %v1063, %v1063
        %v1066 = vpack.c.bf16 %v1064, %v1064
        %v1067 = vld [vmem:[#allocation4] sm:$0xff]
        %v1068 = vld [vmem:[#allocation4 + $0x8] sm:$0xff]
        %1070 = vset.pattern.permute.xlu0 0
        %1071 = vperm.xlu0 %1070, %v1067
        %v1072 = vpop.permute.xlu0 %1071
        %1075 = vset.pattern.permute.xlu0 0
        %1076 = vperm.xlu0 %1075, %v1068
        %v1077 = vpop.permute.xlu0 %1076
        %vm1079 = vcmask 785408
        %v1081 = vsel %vm1079, %v1061, 0
        %v1084 = vsel %vm1079, %v1065, 0
        %1086 = vmatprep.subr.bf16.mxu0 0
        %1087 = vmatpush1.bf16.xpose.msra.mxu0 %v1084
        %1088 = vmatprep.subr.bf16.mxu0 0
        %1089 = vmatpush1.bf16.xpose.msra.mxu0 0
        %1090 = vmatprep.subr.bf16.mxu0 0
        %1091 = vmatpush1.bf16.xpose.msra.mxu0 0
        %1092 = vmatprep.subr.bf16.mxu0 0
        %1093 = vmatpush1.bf16.xpose.msra.mxu0 0
        %1094 = vmatprep.subr.bf16.mxu0 0
        %1095 = vmatpush1.bf16.xpose.msra.mxu0 0
        %1096 = vmatprep.subr.bf16.mxu0 0
        %1097 = vmatpush1.bf16.xpose.msra.mxu0 0
        %1098 = vmatprep.subr.bf16.mxu0 0
        %1099 = vmatpush1.bf16.xpose.msra.mxu0 0
        %1100 = vmatprep.subr.bf16.mxu0 0
        %1101 = vmatpush1.bf16.xpose.msra.mxu0 0
        %1102 = vmatprep.subr.bf16.mxu0 0
        %1103 = vmatpush1.bf16.xpose.msra.mxu0 0
        %1104 = vmatprep.subr.bf16.mxu0 0
        %1105 = vmatpush1.bf16.xpose.msra.mxu0 0
        %1106 = vmatprep.subr.bf16.mxu0 0
        %1107 = vmatpush1.bf16.xpose.msra.mxu0 0
        %1108 = vmatprep.subr.bf16.mxu0 0
        %1109 = vmatpush1.bf16.xpose.msra.mxu0 0
        %1110 = vmatprep.subr.bf16.mxu0 0
        %1111 = vmatpush1.bf16.xpose.msra.mxu0 0
        %1112 = vmatprep.subr.bf16.mxu0 0
        %1113 = vmatpush1.bf16.xpose.msra.mxu0 0
        %1114 = vmatprep.subr.bf16.mxu0 0
        %1115 = vmatpush1.bf16.xpose.msra.mxu0 0
        %1116 = vmatprep.subr.bf16.mxu0 0
        %1117 = vmatpush1.bf16.xpose.msra.mxu0 0
        %1118 = vmatprep.mubr.bf16.mxu0 0
        %1119 = vmatmul.mubr.bf16.gmra.mrb[0].mxu0 %v1081
        %v1120 = vpop.f32.mrb[0].mxu0
        %v1121 = vadd.f32 %v1072, %v1120
        %v1122 = vpop.f32.mrb[0].mxu0
        %v1123 = vpop.f32.mrb[0].mxu0
        %v1124 = vpop.f32.mrb[0].mxu0
        %1125 = vdwg.mxu0
        %v1127 = vsel %vm1079, %v1062, 0
        %v1130 = vsel %vm1079, %v1066, 0
        %1132 = vmatprep.subr.bf16.mxu0 0
        %1133 = vmatpush1.bf16.xpose.msra.mxu0 %v1130
        %1134 = vmatprep.subr.bf16.mxu0 0
        %1135 = vmatpush1.bf16.xpose.msra.mxu0 0
        %1136 = vmatprep.subr.bf16.mxu0 0
        %1137 = vmatpush1.bf16.xpose.msra.mxu0 0
        %1138 = vmatprep.subr.bf16.mxu0 0
        %1139 = vmatpush1.bf16.xpose.msra.mxu0 0
        %1140 = vmatprep.subr.bf16.mxu0 0
        %1141 = vmatpush1.bf16.xpose.msra.mxu0 0
        %1142 = vmatprep.subr.bf16.mxu0 0
        %1143 = vmatpush1.bf16.xpose.msra.mxu0 0
        %1144 = vmatprep.subr.bf16.mxu0 0
        %1145 = vmatpush1.bf16.xpose.msra.mxu0 0
        %1146 = vmatprep.subr.bf16.mxu0 0
        %1147 = vmatpush1.bf16.xpose.msra.mxu0 0
        %1148 = vmatprep.subr.bf16.mxu0 0
        %1149 = vmatpush1.bf16.xpose.msra.mxu0 0
        %1150 = vmatprep.subr.bf16.mxu0 0
        %1151 = vmatpush1.bf16.xpose.msra.mxu0 0
        %1152 = vmatprep.subr.bf16.mxu0 0
        %1153 = vmatpush1.bf16.xpose.msra.mxu0 0
        %1154 = vmatprep.subr.bf16.mxu0 0
        %1155 = vmatpush1.bf16.xpose.msra.mxu0 0
        %1156 = vmatprep.subr.bf16.mxu0 0
        %1157 = vmatpush1.bf16.xpose.msra.mxu0 0
        %1158 = vmatprep.subr.bf16.mxu0 0
        %1159 = vmatpush1.bf16.xpose.msra.mxu0 0
        %1160 = vmatprep.subr.bf16.mxu0 0
        %1161 = vmatpush1.bf16.xpose.msra.mxu0 0
        %1162 = vmatprep.subr.bf16.mxu0 0
        %1163 = vmatpush1.bf16.xpose.msra.mxu0 0
        %1164 = vmatprep.mubr.bf16.mxu0 0
        %1165 = vmatmul.mubr.bf16.gmra.mrb[0].mxu0 %v1127
        %v1166 = vpop.f32.mrb[0].mxu0
        %v1167 = vadd.f32 %v1077, %v1166
        %v1168 = vpop.f32.mrb[0].mxu0
        %v1169 = vpop.f32.mrb[0].mxu0
        %v1170 = vpop.f32.mrb[0].mxu0
        %1171 = vdwg.mxu0
        %vm1172 = vcmask 64512
        %v1173 = vsel %vm1172, %v1121, -inf
        %1174 = vmax.xlane.f32.xlu0 %v1173
        %v1175 = vpop.xlane.xlu0 %1174
        %v1176 = vsel %vm1172, %v1167, -inf
        %1177 = vmax.xlane.f32.xlu0 %v1176
        %v1178 = vpop.xlane.xlu0 %1177
        %v1179 = vrot.slane %v1175, 4
        %v1180 = vmax.f32 %v1175, %v1179
        %v1181 = vrot.slane %v1180, 2
        %v1182 = vmax.f32 %v1180, %v1181
        %v1183 = vrot.slane %v1182, 1
        %v1184 = vmax.f32 %v1182, %v1183
        %v1185 = vrot.slane %v1178, 4
        %v1186 = vmax.f32 %v1178, %v1185
        %v1187 = vrot.slane %v1186, 2
        %v1188 = vmax.f32 %v1186, %v1187
        %v1189 = vrot.slane %v1188, 1
        %v1190 = vmax.f32 %v1188, %v1189
        %vm1191 = vcmp.eq.f32.partialorder %v1184, -inf
        %vm1192 = vcmp.eq.f32.partialorder %v1190, -inf
        %v1193 = vsel %vm1191, 0.0, %v1184
        %v1194 = vsel %vm1192, 0.0, %v1190
        %v1195 = vsub.f32 %v1121, %v1193
        %v1196 = vsub.f32 %v1167, %v1194
        %v1197 = vmul.f32 %v1195, 1.442695
        %v1198 = vpow.pop %v1197
        %v1199 = vmul.f32 %v1196, 1.442695
        %v1200 = vpow.pop %v1199
        %v1201 = vsel %vm1172, %v1198, 0.0
        %1202 = vadd.xlane.f32.xlu0 %v1201
        %v1203 = vpop.xlane.xlu0 %1202
        %v1204 = vsel %vm1172, %v1200, 0.0
        %1205 = vadd.xlane.f32.xlu0 %v1204
        %v1206 = vpop.xlane.xlu0 %1205
        %v1207 = vrot.slane %v1203, 4
        %v1208 = vadd.f32 %v1203, %v1207
        %v1209 = vrot.slane %v1208, 2
        %v1210 = vadd.f32 %v1208, %v1209
        %v1211 = vrot.slane %v1210, 1
        %v1212 = vadd.f32 %v1210, %v1211
        %v1213 = vrot.slane %v1206, 4
        %v1214 = vadd.f32 %v1206, %v1213
        %v1215 = vrot.slane %v1214, 2
        %v1216 = vadd.f32 %v1214, %v1215
        %v1217 = vrot.slane %v1216, 1
        %v1218 = vadd.f32 %v1216, %v1217
        %v1219 = vmax.f32 %v1212, 1e-30
        %v1220 = vmax.f32 %v1218, 1e-30
        %v1221 = vrcp.pop %v1219
        %v1222 = vrcp.pop %v1220
        %v1223 = vmul.f32 %v1198, %v1221
        %v1224 = vmul.f32 %v1200, %v1222
        %1225 = vst.msk [vmem:[%s858] sm:$0xff] %vm1172, %v1223
        %1226 = vst.msk [vmem:[%s858 + $0x8] sm:$0xff] %vm1172, %v1224
        %v1227 = vld [vmem:[#allocation7] sm:$0xff]
        %v1228 = vld [vmem:[#allocation7 + $0x8] sm:$0xff]
        %v1229 = vpack.c.bf16 %v1228, %v1227
        %v1230 = vld [vmem:[%s865] sm:$0xf]
        %v1231 = vld [vmem:[%s865 + $0x4] sm:$0xf]
        %v1232 = vld [vmem:[%s865 + $0x8] sm:$0xf]
        %v1233 = vld [vmem:[%s865 + $0xc] sm:$0xf]
        %v1234 = vld [vmem:[%s755] sm:$0x1]
        %v1236 = vlaneseq
        %v1237 = vshrl.u32 %v1236, 7
        %v1238 = vsub.s32 0, %v1237
        %v1239 = vrot.slane %v1234, %v1238
        %v1245 = vunpack.c.l.b16 %v1230
        %v1246 = vunpack.c.l.b16 %v1231
        %v1247 = vunpack.c.l.b16 %v1232
        %v1248 = vunpack.c.l.b16 %v1233
        %v1249 = vpack.c.b16 %v1246, %v1245
        %v1250 = vpack.c.b16 %v1248, %v1247
        %vm1253 = vcmask 261120
        %v1255 = vsel %vm1253, %v1229, 0
        %1257 = vmatprep.subr.bf16.mxu0 0
        %1258 = vmatpush1.bf16.msra.mxu0 %v1249
        %1259 = vmatprep.subr.bf16.mxu0 0
        %1260 = vmatpush1.bf16.msra.mxu0 %v1250
        %1261 = vmatprep.subr.bf16.mxu0 0
        %1262 = vmatpush1.bf16.msra.mxu0 0
        %1263 = vmatprep.subr.bf16.mxu0 0
        %1264 = vmatpush1.bf16.msra.mxu0 0
        %1265 = vmatprep.subr.bf16.mxu0 0
        %1266 = vmatpush1.bf16.msra.mxu0 0
        %1267 = vmatprep.subr.bf16.mxu0 0
        %1268 = vmatpush1.bf16.msra.mxu0 0
        %1269 = vmatprep.subr.bf16.mxu0 0
        %1270 = vmatpush1.bf16.msra.mxu0 0
        %1271 = vmatprep.subr.bf16.mxu0 0
        %1272 = vmatpush1.bf16.msra.mxu0 0
        %1273 = vmatprep.subr.bf16.mxu0 0
        %1274 = vmatpush1.bf16.msra.mxu0 0
        %1275 = vmatprep.subr.bf16.mxu0 0
        %1276 = vmatpush1.bf16.msra.mxu0 0
        %1277 = vmatprep.subr.bf16.mxu0 0
        %1278 = vmatpush1.bf16.msra.mxu0 0
        %1279 = vmatprep.subr.bf16.mxu0 0
        %1280 = vmatpush1.bf16.msra.mxu0 0
        %1281 = vmatprep.subr.bf16.mxu0 0
        %1282 = vmatpush1.bf16.msra.mxu0 0
        %1283 = vmatprep.subr.bf16.mxu0 0
        %1284 = vmatpush1.bf16.msra.mxu0 0
        %1285 = vmatprep.subr.bf16.mxu0 0
        %1286 = vmatpush1.bf16.msra.mxu0 0
        %1287 = vmatprep.subr.bf16.mxu0 0
        %1288 = vmatpush1.bf16.msra.mxu0 0
        %1289 = vmatprep.mubr.bf16.mxu0 0
        %1290 = vmatmul.mubr.bf16.gmra.mrb[0].mxu0 %v1255
        %v1291 = vpop.f32.mrb[0].mxu0
        %v1292 = vadd.f32 %v1239, %v1291
        %v1293 = vpop.f32.mrb[0].mxu0
        %v1294 = vpop.f32.mrb[0].mxu0
        %v1295 = vadd.f32 %v1239, %v1294
        %v1296 = vpop.f32.mrb[0].mxu0
        %1297 = vdwg.mxu0
        %v1298 = vmax.f32 %v1292, 0.0
        %v1299 = vmax.f32 %v1295, 0.0
        %v1300 = vld [vmem:[#allocation5] sm:$0xff]
        %v1301 = vld [vmem:[#allocation5 + $0x8] sm:$0xff]
        %v1302 = vpack.c.bf16 %v1301, %v1300
        %v1303 = vld [vmem:[%s870] sm:$0xf]
        %v1304 = vld [vmem:[%s870 + $0x4] sm:$0xf]
        %v1305 = vld [vmem:[%s870 + $0x8] sm:$0xf]
        %v1306 = vld [vmem:[%s870 + $0xc] sm:$0xf]
        %v1307 = vld [vmem:[%s763] sm:$0x1]
        %v1309 = vlaneseq
        %v1310 = vshrl.u32 %v1309, 7
        %v1311 = vsub.s32 0, %v1310
        %v1312 = vrot.slane %v1307, %v1311
        %v1318 = vunpack.c.l.b16 %v1303
        %v1319 = vunpack.c.l.b16 %v1304
        %v1320 = vunpack.c.l.b16 %v1305
        %v1321 = vunpack.c.l.b16 %v1306
        %v1322 = vpack.c.b16 %v1319, %v1318
        %v1323 = vpack.c.b16 %v1321, %v1320
        %v1327 = vsel %vm1253, %v1302, 0
        %1329 = vmatprep.subr.bf16.mxu0 0
        %1330 = vmatpush1.bf16.msra.mxu0 %v1322
        %1331 = vmatprep.subr.bf16.mxu0 0
        %1332 = vmatpush1.bf16.msra.mxu0 %v1323
        %1333 = vmatprep.subr.bf16.mxu0 0
        %1334 = vmatpush1.bf16.msra.mxu0 0
        %1335 = vmatprep.subr.bf16.mxu0 0
        %1336 = vmatpush1.bf16.msra.mxu0 0
        %1337 = vmatprep.subr.bf16.mxu0 0
        %1338 = vmatpush1.bf16.msra.mxu0 0
        %1339 = vmatprep.subr.bf16.mxu0 0
        %1340 = vmatpush1.bf16.msra.mxu0 0
        %1341 = vmatprep.subr.bf16.mxu0 0
        %1342 = vmatpush1.bf16.msra.mxu0 0
        %1343 = vmatprep.subr.bf16.mxu0 0
        %1344 = vmatpush1.bf16.msra.mxu0 0
        %1345 = vmatprep.subr.bf16.mxu0 0
        %1346 = vmatpush1.bf16.msra.mxu0 0
        %1347 = vmatprep.subr.bf16.mxu0 0
        %1348 = vmatpush1.bf16.msra.mxu0 0
        %1349 = vmatprep.subr.bf16.mxu0 0
        %1350 = vmatpush1.bf16.msra.mxu0 0
        %1351 = vmatprep.subr.bf16.mxu0 0
        %1352 = vmatpush1.bf16.msra.mxu0 0
        %1353 = vmatprep.subr.bf16.mxu0 0
        %1354 = vmatpush1.bf16.msra.mxu0 0
        %1355 = vmatprep.subr.bf16.mxu0 0
        %1356 = vmatpush1.bf16.msra.mxu0 0
        %1357 = vmatprep.subr.bf16.mxu0 0
        %1358 = vmatpush1.bf16.msra.mxu0 0
        %1359 = vmatprep.subr.bf16.mxu0 0
        %1360 = vmatpush1.bf16.msra.mxu0 0
        %1361 = vmatprep.mubr.bf16.mxu0 0
        %1362 = vmatmul.mubr.bf16.gmra.mrb[0].mxu0 %v1327
        %v1363 = vpop.f32.mrb[0].mxu0
        %v1364 = vadd.f32 %v1312, %v1363
        %v1365 = vpop.f32.mrb[0].mxu0
        %v1366 = vpop.f32.mrb[0].mxu0
        %v1367 = vadd.f32 %v1312, %v1366
        %v1368 = vpop.f32.mrb[0].mxu0
        %1369 = vdwg.mxu0
        %v1370 = vmax.f32 %v1364, 0.0
        %v1371 = vmax.f32 %v1367, 0.0
        %v1372 = vpack.c.bf16 %v1223, %v1223
        %v1373 = vpack.c.bf16 %v1224, %v1224
        %v1374 = vpack.c.bf16 %v1370, %v1370
        %v1375 = vpack.c.bf16 %v1371, %v1371
        %v1377 = vsel %vm1172, %v1372, 0
        %vm1379 = vcmask 1043456
        %v1381 = vsel %vm1379, %v1374, 0
        %1383 = vmatprep.subr.bf16.mxu0 0
        %1384 = vmatpush1.bf16.msra.mxu0 %v1381
        %1385 = vmatprep.subr.bf16.mxu0 0
        %1386 = vmatpush1.bf16.msra.mxu0 0
        %1387 = vmatprep.subr.bf16.mxu0 0
        %1388 = vmatpush1.bf16.msra.mxu0 0
        %1389 = vmatprep.subr.bf16.mxu0 0
        %1390 = vmatpush1.bf16.msra.mxu0 0
        %1391 = vmatprep.subr.bf16.mxu0 0
        %1392 = vmatpush1.bf16.msra.mxu0 0
        %1393 = vmatprep.subr.bf16.mxu0 0
        %1394 = vmatpush1.bf16.msra.mxu0 0
        %1395 = vmatprep.subr.bf16.mxu0 0
        %1396 = vmatpush1.bf16.msra.mxu0 0
        %1397 = vmatprep.subr.bf16.mxu0 0
        %1398 = vmatpush1.bf16.msra.mxu0 0
        %1399 = vmatprep.subr.bf16.mxu0 0
        %1400 = vmatpush1.bf16.msra.mxu0 0
        %1401 = vmatprep.subr.bf16.mxu0 0
        %1402 = vmatpush1.bf16.msra.mxu0 0
        %1403 = vmatprep.subr.bf16.mxu0 0
        %1404 = vmatpush1.bf16.msra.mxu0 0
        %1405 = vmatprep.subr.bf16.mxu0 0
        %1406 = vmatpush1.bf16.msra.mxu0 0
        %1407 = vmatprep.subr.bf16.mxu0 0
        %1408 = vmatpush1.bf16.msra.mxu0 0
        %1409 = vmatprep.subr.bf16.mxu0 0
        %1410 = vmatpush1.bf16.msra.mxu0 0
        %1411 = vmatprep.subr.bf16.mxu0 0
        %1412 = vmatpush1.bf16.msra.mxu0 0
        %1413 = vmatprep.subr.bf16.mxu0 0
        %1414 = vmatpush1.bf16.msra.mxu0 0
        %1415 = vmatprep.mubr.bf16.mxu0 0
        %1416 = vmatmul.mubr.bf16.gmra.mrb[0].mxu0 %v1377
        %v1417 = vpop.f32.mrb[0].mxu0
        %v1418 = vadd.f32 0.0, %v1417
        %v1419 = vpop.f32.mrb[0].mxu0
        %v1420 = vpop.f32.mrb[0].mxu0
        %v1421 = vpop.f32.mrb[0].mxu0
        %1422 = vdwg.mxu0
        %v1424 = vsel %vm1172, %v1373, 0
        %v1427 = vsel %vm1379, %v1375, 0
        %1429 = vmatprep.subr.bf16.mxu0 0
        %1430 = vmatpush1.bf16.msra.mxu0 %v1427
        %1431 = vmatprep.subr.bf16.mxu0 0
        %1432 = vmatpush1.bf16.msra.mxu0 0
        %1433 = vmatprep.subr.bf16.mxu0 0
        %1434 = vmatpush1.bf16.msra.mxu0 0
        %1435 = vmatprep.subr.bf16.mxu0 0
        %1436 = vmatpush1.bf16.msra.mxu0 0
        %1437 = vmatprep.subr.bf16.mxu0 0
        %1438 = vmatpush1.bf16.msra.mxu0 0
        %1439 = vmatprep.subr.bf16.mxu0 0
        %1440 = vmatpush1.bf16.msra.mxu0 0
        %1441 = vmatprep.subr.bf16.mxu0 0
        %1442 = vmatpush1.bf16.msra.mxu0 0
        %1443 = vmatprep.subr.bf16.mxu0 0
        %1444 = vmatpush1.bf16.msra.mxu0 0
        %1445 = vmatprep.subr.bf16.mxu0 0
        %1446 = vmatpush1.bf16.msra.mxu0 0
        %1447 = vmatprep.subr.bf16.mxu0 0
        %1448 = vmatpush1.bf16.msra.mxu0 0
        %1449 = vmatprep.subr.bf16.mxu0 0
        %1450 = vmatpush1.bf16.msra.mxu0 0
        %1451 = vmatprep.subr.bf16.mxu0 0
        %1452 = vmatpush1.bf16.msra.mxu0 0
        %1453 = vmatprep.subr.bf16.mxu0 0
        %1454 = vmatpush1.bf16.msra.mxu0 0
        %1455 = vmatprep.subr.bf16.mxu0 0
        %1456 = vmatpush1.bf16.msra.mxu0 0
        %1457 = vmatprep.subr.bf16.mxu0 0
        %1458 = vmatpush1.bf16.msra.mxu0 0
        %1459 = vmatprep.subr.bf16.mxu0 0
        %1460 = vmatpush1.bf16.msra.mxu0 0
        %1461 = vmatprep.mubr.bf16.mxu0 0
        %1462 = vmatmul.mubr.bf16.gmra.mrb[0].mxu0 %v1424
        %v1463 = vpop.f32.mrb[0].mxu0
        %v1464 = vadd.f32 0.0, %v1463
        %v1465 = vpop.f32.mrb[0].mxu0
        %v1466 = vpop.f32.mrb[0].mxu0
        %v1467 = vpop.f32.mrb[0].mxu0
        %1468 = vdwg.mxu0
        %v1469 = vmul.f32 %v1418, %v1298
        %v1470 = vmul.f32 %v1464, %v1299
        %v1471 = vsel %vm1253, %v1469, 0.0
        %v1472 = vrot.slane %v1471, 4
        %v1473 = vadd.f32 %v1471, %v1472
        %v1474 = vrot.slane %v1473, 2
        %v1475 = vadd.f32 %v1473, %v1474
        %v1476 = vrot.slane %v1475, 1
        %v1477 = vadd.f32 %v1475, %v1476
        %v1478 = vsel %vm1253, %v1470, 0.0
        %v1479 = vrot.slane %v1478, 4
        %v1480 = vadd.f32 %v1478, %v1479
        %v1481 = vrot.slane %v1480, 2
        %v1482 = vadd.f32 %v1480, %v1481
        %v1483 = vrot.slane %v1482, 1
        %v1484 = vadd.f32 %v1482, %v1483
        %v1485 = vpack.c.bf16 %v1477, %v1477
        %v1486 = vpack.c.bf16 %v1484, %v1484
        %v1487 = vld [vmem:[%s772] sm:$0xf]
        %v1488 = vld [vmem:[%s772 + $0x4] sm:$0xf]
        %v1489 = vld [vmem:[%s772 + $0x8] sm:$0xf]
        %v1490 = vld [vmem:[%s772 + $0xc] sm:$0xf]
        %v1491 = vld [vmem:[%s780] sm:$0x1]
        %v1493 = vlaneseq
        %v1494 = vshrl.u32 %v1493, 7
        %v1495 = vsub.s32 0, %v1494
        %v1496 = vrot.slane %v1491, %v1495
        %v1500 = vunpack.c.l.b16 %v1485
        %v1501 = vunpack.c.l.b16 %v1486
        %vm1502 = vcmask 1041409
        %v1503 = vsel %vm1502, %v1501, %v1500
        %v1504 = vpack.c.b16 %v1503, %v1503
        %v1509 = vunpack.c.l.b16 %v1487
        %v1510 = vunpack.c.l.b16 %v1488
        %v1511 = vunpack.c.l.b16 %v1489
        %v1512 = vunpack.c.l.b16 %v1490
        %v1513 = vpack.c.b16 %v1510, %v1509
        %v1514 = vpack.c.b16 %v1512, %v1511
        %v1518 = vsel %vm1253, %v1504, 0
        %1520 = vmatprep.subr.bf16.mxu0 0
        %1521 = vmatpush1.bf16.msra.mxu0 %v1513
        %1522 = vmatprep.subr.bf16.mxu0 0
        %1523 = vmatpush1.bf16.msra.mxu0 %v1514
        %1524 = vmatprep.subr.bf16.mxu0 0
        %1525 = vmatpush1.bf16.msra.mxu0 0
        %1526 = vmatprep.subr.bf16.mxu0 0
        %1527 = vmatpush1.bf16.msra.mxu0 0
        %1528 = vmatprep.subr.bf16.mxu0 0
        %1529 = vmatpush1.bf16.msra.mxu0 0
        %1530 = vmatprep.subr.bf16.mxu0 0
        %1531 = vmatpush1.bf16.msra.mxu0 0
        %1532 = vmatprep.subr.bf16.mxu0 0
        %1533 = vmatpush1.bf16.msra.mxu0 0
        %1534 = vmatprep.subr.bf16.mxu0 0
        %1535 = vmatpush1.bf16.msra.mxu0 0
        %1536 = vmatprep.subr.bf16.mxu0 0
        %1537 = vmatpush1.bf16.msra.mxu0 0
        %1538 = vmatprep.subr.bf16.mxu0 0
        %1539 = vmatpush1.bf16.msra.mxu0 0
        %1540 = vmatprep.subr.bf16.mxu0 0
        %1541 = vmatpush1.bf16.msra.mxu0 0
        %1542 = vmatprep.subr.bf16.mxu0 0
        %1543 = vmatpush1.bf16.msra.mxu0 0
        %1544 = vmatprep.subr.bf16.mxu0 0
        %1545 = vmatpush1.bf16.msra.mxu0 0
        %1546 = vmatprep.subr.bf16.mxu0 0
        %1547 = vmatpush1.bf16.msra.mxu0 0
        %1548 = vmatprep.subr.bf16.mxu0 0
        %1549 = vmatpush1.bf16.msra.mxu0 0
        %1550 = vmatprep.subr.bf16.mxu0 0
        %1551 = vmatpush1.bf16.msra.mxu0 0
        %1552 = vmatprep.mubr.bf16.mxu0 0
        %1553 = vmatmul.mubr.bf16.gmra.mrb[0].mxu0 %v1518
        %v1554 = vpop.f32.mrb[0].mxu0
        %v1555 = vadd.f32 %v1496, %v1554
        %v1556 = vpop.f32.mrb[0].mxu0
        %v1557 = vpop.f32.mrb[0].mxu0
        %v1558 = vpop.f32.mrb[0].mxu0
        %1559 = vdwg.mxu0
        %v1560 = vld [vmem:[#allocation5] sm:$0xff]
        %v1561 = vld [vmem:[#allocation5 + $0x8] sm:$0xff]
        %v1564 = vunpack.c.l.s4 1966171168
        %v1565 = vunpack.c.0.s8 %v1564
        %v1566 = vlaneseq
        %v1567 = vshrl.u32 %v1566, 7
        %v1568 = vsub.s32 %v1565, %v1567
        %v1569 = vrot.slane %v1555, %v1568
        %v1570 = vcombine.high %v1569, %v1569
        %v1572 = vunpack.c.l.s4 1966171168
        %v1573 = vunpack.c.0.s8 %v1572
        %v1574 = vlaneseq
        %v1575 = vshrl.u32 %v1574, 7
        %v1576 = vsub.s32 %v1573, %v1575
        %v1577 = vrot.slane %v1569, %v1576
        %v1579 = vunpack.c.l.s4 1966171168
        %v1580 = vunpack.c.0.s8 %v1579
        %v1581 = vlaneseq
        %v1582 = vshrl.u32 %v1581, 7
        %v1583 = vsub.s32 %v1580, %v1582
        %v1584 = vrot.slane %v1570, %v1583
        %v1585 = vlaneseq
        %v1586 = vshrl.u32 %v1585, 7
        %v1587 = vsub.s32 0, %v1586
        %v1588 = vrot.slane %v1577, %v1587
        %v1589 = vlaneseq
        %v1590 = vshrl.u32 %v1589, 7
        %v1591 = vsub.s32 0, %v1590
        %v1592 = vrot.slane %v1584, %v1591
        %v1595 = vadd.f32 %v1560, %v1588
        %v1596 = vadd.f32 %v1561, %v1592
        %1597 = vst.msk [vmem:[#allocation5] sm:$0xff] %vm1253, %v1595
        %1598 = vst.msk [vmem:[#allocation5 + $0x8] sm:$0xff] %vm1253, %v1596
        %v1599 = vld [vmem:[#allocation6] sm:$0x3]
        %v1600 = vsel %vm1253, %v1595, 0.0
        %v1601 = vrot.slane %v1600, 4
        %v1602 = vadd.f32 %v1600, %v1601
        %v1603 = vrot.slane %v1602, 2
        %v1604 = vadd.f32 %v1602, %v1603
        %v1605 = vrot.slane %v1604, 1
        %v1606 = vadd.f32 %v1604, %v1605
        %v1607 = vsel %vm1253, %v1596, 0.0
        %v1608 = vrot.slane %v1607, 4
        %v1609 = vadd.f32 %v1607, %v1608
        %v1610 = vrot.slane %v1609, 2
        %v1611 = vadd.f32 %v1609, %v1610
        %v1612 = vrot.slane %v1611, 1
        %v1613 = vadd.f32 %v1611, %v1612
        %v1616 = vsel %vm1502, %v1613, %v1606
        %v1618 = vadd.f32 %v1599, %v1616
        %vm1619 = vcmask 254976
        %1620 = vst.msk [vmem:[#allocation6] sm:$0x3] %vm1619, %v1618
        %p1621 = scmp.eq.s32.totalorder %s51, 1
        // Predicated region
        $region133: #{tpu_custom_call.1} parent=87 // pred_check
          %p1622 = pneg %p1621
        $region134: #{tpu_custom_call.1} parent=87 // pred_check_branch
          %1624 = sbr.rel (%p1622) target = $region136
        $region135: #{tpu_custom_call.1} parent=87 // pred_region
          %v1625 = vld [vmem:[#allocation6] sm:$0x3]
          %v1626 = vpack.c.bf16 %v1625, %v1625
          %v1627 = vld [vmem:[%s13] sm:$0xf]
          %v1628 = vld [vmem:[%s13 + $0x4] sm:$0xf]
          %v1629 = vld [vmem:[%s13 + $0x8] sm:$0xf]
          %v1630 = vld [vmem:[%s13 + $0xc] sm:$0xf]
          %v1631 = vld [vmem:[%s14] sm:$0x1]
          %v1633 = vlaneseq
          %v1634 = vshrl.u32 %v1633, 7
          %v1635 = vsub.s32 0, %v1634
          %v1636 = vrot.slane %v1631, %v1635
          %v1642 = vunpack.c.l.b16 %v1627
          %v1643 = vunpack.c.l.b16 %v1628
          %v1644 = vunpack.c.l.b16 %v1629
          %v1645 = vunpack.c.l.b16 %v1630
          %v1646 = vpack.c.b16 %v1643, %v1642
          %v1647 = vpack.c.b16 %v1645, %v1644
          %v1651 = vsel %vm1253, %v1626, 0
          %1653 = vmatprep.subr.bf16.mxu0 0
          %1654 = vmatpush1.bf16.msra.mxu0 %v1646
          %1655 = vmatprep.subr.bf16.mxu0 0
          %1656 = vmatpush1.bf16.msra.mxu0 %v1647
          %1657 = vmatprep.subr.bf16.mxu0 0
          %1658 = vmatpush1.bf16.msra.mxu0 0
          %1659 = vmatprep.subr.bf16.mxu0 0
          %1660 = vmatpush1.bf16.msra.mxu0 0
          %1661 = vmatprep.subr.bf16.mxu0 0
          %1662 = vmatpush1.bf16.msra.mxu0 0
          %1663 = vmatprep.subr.bf16.mxu0 0
          %1664 = vmatpush1.bf16.msra.mxu0 0
          %1665 = vmatprep.subr.bf16.mxu0 0
          %1666 = vmatpush1.bf16.msra.mxu0 0
          %1667 = vmatprep.subr.bf16.mxu0 0
          %1668 = vmatpush1.bf16.msra.mxu0 0
          %1669 = vmatprep.subr.bf16.mxu0 0
          %1670 = vmatpush1.bf16.msra.mxu0 0
          %1671 = vmatprep.subr.bf16.mxu0 0
          %1672 = vmatpush1.bf16.msra.mxu0 0
          %1673 = vmatprep.subr.bf16.mxu0 0
          %1674 = vmatpush1.bf16.msra.mxu0 0
          %1675 = vmatprep.subr.bf16.mxu0 0
          %1676 = vmatpush1.bf16.msra.mxu0 0
          %1677 = vmatprep.subr.bf16.mxu0 0
          %1678 = vmatpush1.bf16.msra.mxu0 0
          %1679 = vmatprep.subr.bf16.mxu0 0
          %1680 = vmatpush1.bf16.msra.mxu0 0
          %1681 = vmatprep.subr.bf16.mxu0 0
          %1682 = vmatpush1.bf16.msra.mxu0 0
          %1683 = vmatprep.subr.bf16.mxu0 0
          %1684 = vmatpush1.bf16.msra.mxu0 0
          %1685 = vmatprep.mubr.bf16.mxu0 0
          %1686 = vmatmul.mubr.bf16.gmra.mrb[0].mxu0 %v1651
          %v1687 = vpop.f32.mrb[0].mxu0
          %v1688 = vadd.f32 %v1636, %v1687
          %v1689 = vpop.f32.mrb[0].mxu0
          %v1690 = vpop.f32.mrb[0].mxu0
          %v1691 = vpop.f32.mrb[0].mxu0
          %1692 = vdwg.mxu0
          %v1693 = vmax.f32 %v1688, 0.0
          %v1694 = vpack.c.bf16 %v1693, %v1693
          %v1695 = vld [vmem:[%s15] sm:$0xf]
          %v1696 = vld [vmem:[%s15 + $0x4] sm:$0xf]
          %v1697 = vld [vmem:[%s15 + $0x8] sm:$0xf]
          %v1698 = vld [vmem:[%s15 + $0xc] sm:$0xf]
          %v1699 = vld [vmem:[%s15 + $0x10] sm:$0xf]
          %v1700 = vld [vmem:[%s15 + $0x14] sm:$0xf]
          %v1701 = vld [vmem:[%s15 + $0x18] sm:$0xf]
          %v1702 = vld [vmem:[%s15 + $0x1c] sm:$0xf]
          %v1703 = vld [vmem:[%s16] sm:$0x1]
          %v1705 = vlaneseq
          %v1706 = vshrl.u32 %v1705, 7
          %v1707 = vsub.s32 0, %v1706
          %v1708 = vrot.slane %v1703, %v1707
          %v1718 = vunpack.c.l.b16 %v1695
          %v1719 = vunpack.c.l.b16 %v1696
          %v1720 = vunpack.c.l.b16 %v1697
          %v1721 = vunpack.c.l.b16 %v1698
          %v1722 = vunpack.c.l.b16 %v1699
          %v1723 = vunpack.c.l.b16 %v1700
          %v1724 = vunpack.c.l.b16 %v1701
          %v1725 = vunpack.c.l.b16 %v1702
          %v1726 = vpack.c.b16 %v1719, %v1718
          %v1727 = vpack.c.b16 %v1721, %v1720
          %v1728 = vpack.c.b16 %v1723, %v1722
          %v1729 = vpack.c.b16 %v1725, %v1724
          %vm1734 = vcmask 523264
          %v1736 = vsel %vm1734, %v1694, 0
          %1738 = vmatprep.subr.bf16.mxu0 0
          %1739 = vmatpush1.bf16.msra.mxu0 %v1726
          %1740 = vmatprep.subr.bf16.mxu0 0
          %1741 = vmatpush1.bf16.msra.mxu0 %v1727
          %1742 = vmatprep.subr.bf16.mxu0 0
          %1743 = vmatpush1.bf16.msra.mxu0 %v1728
          %1744 = vmatprep.subr.bf16.mxu0 0
          %1745 = vmatpush1.bf16.msra.mxu0 %v1729
          %1746 = vmatprep.subr.bf16.mxu0 0
          %1747 = vmatpush1.bf16.msra.mxu0 0
          %1748 = vmatprep.subr.bf16.mxu0 0
          %1749 = vmatpush1.bf16.msra.mxu0 0
          %1750 = vmatprep.subr.bf16.mxu0 0
          %1751 = vmatpush1.bf16.msra.mxu0 0
          %1752 = vmatprep.subr.bf16.mxu0 0
          %1753 = vmatpush1.bf16.msra.mxu0 0
          %1754 = vmatprep.subr.bf16.mxu0 0
          %1755 = vmatpush1.bf16.msra.mxu0 0
          %1756 = vmatprep.subr.bf16.mxu0 0
          %1757 = vmatpush1.bf16.msra.mxu0 0
          %1758 = vmatprep.subr.bf16.mxu0 0
          %1759 = vmatpush1.bf16.msra.mxu0 0
          %1760 = vmatprep.subr.bf16.mxu0 0
          %1761 = vmatpush1.bf16.msra.mxu0 0
          %1762 = vmatprep.subr.bf16.mxu0 0
          %1763 = vmatpush1.bf16.msra.mxu0 0
          %1764 = vmatprep.subr.bf16.mxu0 0
          %1765 = vmatpush1.bf16.msra.mxu0 0
          %1766 = vmatprep.subr.bf16.mxu0 0
          %1767 = vmatpush1.bf16.msra.mxu0 0
          %1768 = vmatprep.subr.bf16.mxu0 0
          %1769 = vmatpush1.bf16.msra.mxu0 0
          %1770 = vmatprep.mubr.bf16.mxu0 0
          %1771 = vmatmul.mubr.bf16.gmra.mrb[0].mxu0 %v1736
          %v1772 = vpop.f32.mrb[0].mxu0
          %v1773 = vadd.f32 %v1708, %v1772
          %v1774 = vpop.f32.mrb[0].mxu0
          %v1775 = vpop.f32.mrb[0].mxu0
          %v1776 = vpop.f32.mrb[0].mxu0
          %1777 = vdwg.mxu0
          %vm1778 = vcmask 123904
          %1779 = vst.msk [vmem:[#allocation24] sm:$0x3] %vm1778, %v1773
        $region136: #{tpu_custom_call.1} parent=87 // pred_fallthru
          _
        %s1780 = sand.u32 %s496, 1
        %s1781 = scalar_lea.sflag [#allocation26], %s1780
        %s1782 = sand.u32 %s496, 1
        %s1783 = smul.addr %s1782, 16
        %s1784 = scalar_lea.vmem [#allocation25], %s1783
        // Predicated region
        $region137: #{tpu_custom_call.1} parent=87 // pred_check
          %p1785 = pneg %p478
        $region138: #{tpu_custom_call.1} parent=87 // pred_check_branch
          %1787 = sbr.rel (%p1785) target = $region140
        $region139: #{tpu_custom_call.1} parent=87 // pred_region
          %s1789 = ssub.s32 32, 32
          %1790 = vsyncadd [#allocation9], %s1789
          %s1791 = smul.addr %s50, 32
          %s1792 = scalar_lea.hbm %s17, %s1791
          %s1794 = sshll.u32 [#allocation24], 4
          %s1795 = int_to_ptr.vmem [resolvable:$true] %s1794
          %1797 = dma.vmem_to_hbm [thread:$0]  %s1795, 32, %s1792, [#allocation9]
        $region140: #{tpu_custom_call.1} parent=87 // pred_fallthru
          _
        // Predicated region
        $region141: #{tpu_custom_call.1} parent=87 // pred_check
          %p1798 = pneg %p506
        $region142: #{tpu_custom_call.1} parent=87 // pred_check_branch
          %1800 = sbr.rel (%p1798) target = $region144
        $region143: #{tpu_custom_call.1} parent=87 // pred_region
          %s1801 = smul.u32 2, %s50
          %s1803 = ssub.s32 256, 256
          %1804 = vsyncadd %s1781, %s1803
          %s1805 = smul.addr %s51, 2
          %s1806 = sadd.s32 %s1801, %s1805
          %s1807 = smul.addr %s1806, 128
          %s1808 = scalar_lea.hbm %s18, %s1807
          %s1809 = sshll.u32 %s1784, 4
          %s1810 = int_to_ptr.vmem [resolvable:$true] %s1809
          %1815 = dma.vmem_to_hbm [thread:$0]  %s1810, 256, %s1808, %s1781, 128, 128, 8
        $region144: #{tpu_custom_call.1} parent=87 // pred_fallthru
          _
        // Predicated region
        $region145: #{tpu_custom_call.1} parent=87 // pred_check
          %p1816 = pneg %p478
        $region146: #{tpu_custom_call.1} parent=87 // pred_check_branch
          %1818 = sbr.rel (%p1816) target = $region148
        $region147: #{tpu_custom_call.1} parent=87 // pred_region
          %1819 = dma.done [#allocation9], 32
        $region148: #{tpu_custom_call.1} parent=87 // pred_fallthru
          _
      $region88: #{tpu_custom_call.1} parent=5 // pred_fallthru
        _
      %p1820 = scmp.le.s32.totalorder 2, %s41
      // Predicated region
      $region149: #{tpu_custom_call.1} parent=5 // pred_check
        %p1821 = pneg %p1820
      $region150: #{tpu_custom_call.1} parent=5 // pred_check_branch
        %1823 = sbr.rel (%p1821) target = $region152
      $region151: #{tpu_custom_call.1} parent=5 // pred_region
        %s1824 = ssub.s32 %s41, 2
        // Predicated region
        $region153: #{tpu_custom_call.1} parent=151 // pred_check
          %p1825 = pneg %p512
        $region154: #{tpu_custom_call.1} parent=151 // pred_check_branch
          %1827 = sbr.rel (%p1825) target = $region156
        $region155: #{tpu_custom_call.1} parent=151 // pred_region
          %s1828 = sand.u32 %s497, 1
          %s1829 = scalar_lea.sflag [#allocation26], %s1828
          %s1830 = sand.u32 %s497, 1
          %s1831 = smul.addr %s1830, 16
          %s1832 = scalar_lea.vmem [#allocation25], %s1831
          %1833 = dma.done %s1829, 256
        $region156: #{tpu_custom_call.1} parent=151 // pred_fallthru
          _
      $region152: #{tpu_custom_call.1} parent=5 // pred_fallthru
        _
    $region6: #{tpu_custom_call.1} parent=1 // loop_footer
      %s45 = sadd.s32 1, %s41
    $region7: #{tpu_custom_call.1} parent=1 // loop_footer_branch
      %40 = sbr.rel target = $region3
    $region8: #{tpu_custom_call.1} parent=1 // loop_exit
      _
    %1834 = vsyncpa [#allocation8], 1
    %s1835 = scalar_lea.sflag [#allocation8], 1
    %1836 = vsyncpa %s1835, 1
    %1837 = vsyncpa [#allocation11], 1
    %1838 = vsyncpa [#allocation14], 1
    %1839 = vsyncpa [#allocation17], 1
    %s1840 = scalar_lea.sflag [#allocation17], 1
    %1841 = vsyncpa %s1840, 1
    %1842 = vsyncpa [#allocation20], 1
    %s1843 = scalar_lea.sflag [#allocation20], 1
    %1844 = vsyncpa %s1843, 1
    %1845 = vsyncpa [#allocation23], 1
    %s1846 = scalar_lea.sflag [#allocation23], 1
    %1847 = vsyncpa %s1846, 1
    %1848 = vsyncpa [#allocation9], 1
    %s1849 = scalar_lea.sflag [#allocation9], 1
    %1850 = vsyncpa %s1849, 1
    %1851 = vsyncpa [#allocation26], 1
    %s1852 = scalar_lea.sflag [#allocation26], 1
    %1853 = vsyncpa %s1852, 1

</llo_original>
